<compile_context>
chip_gen: v5e
topology: v5e:2x2
jax: 0.10.0
libtpu: 0.0.40
codegen_flags: <defaults>
</compile_context>

<pallas_src>
import functools

import jax
import jax.numpy as jnp
from jax.experimental import pallas as pl
from jax.experimental.pallas import tpu as pltpu


def _vq_kernel(x_ref, e2kd_ref, edk_ref, esq_ref, q_ref, sse_ref, *,
               needs_mask, hw, tile_n, spatial_axis):
    """One (D, TN) column tile vs. the full codebook.

    x_ref   : (1, D, TN)   input columns (NCHW-flattened spatial tile), input dtype
    e2kd_ref: (K, D)       -2 * codebook (f32, or bf16 if use_bf16_scores)
    edk_ref : (D, K)       codebook, pre-transposed, f32
    esq_ref : (K, 1)       precomputed ||e_k||^2, f32
    q_ref   : (1, D, TN)   quantized columns (output, input dtype)
    sse_ref : (1, 1, 1, 1) per-tile sum of squared errors (output, f32)
    """
    x32 = x_ref[0].astype(jnp.float32)                                  # (D, TN)
    xs = x32.astype(e2kd_ref.dtype)                                     # no-op in f32 mode

    # Distance proxy per column: ||e_k||^2 - 2 e_k.x  (||x||^2 is argmin-invariant).
    # -2 is folded into e2kd (exact power-of-two scale), so this is a single add.
    scores = jnp.dot(e2kd_ref[...], xs, preferred_element_type=jnp.float32)  # (K, TN)
    dist = scores + esq_ref[...]                                         # (K, TN)

    # First-index argmin over the codebook axis (torch.argmin tie-breaking),
    # reusing the masked iota for the one-hot.
    k = dist.shape[0]
    k_iota = jax.lax.broadcasted_iota(jnp.int32, dist.shape, 0)          # (K, TN)
    min_d = jnp.min(dist, axis=0, keepdims=True)                         # (1, TN)
    masked = jnp.where(dist <= min_d, k_iota, k)                         # (K, TN)
    idx = jnp.min(masked, axis=0, keepdims=True)                         # (1, TN)
    onehot = (masked == idx).astype(jnp.float32)                         # exactly one 1/col

    # Codebook gather as an MXU matmul against the pre-transposed f32 codebook
    # (keeps quantized values exactly equal to codebook rows).
    q = jnp.dot(edk_ref[...], onehot, preferred_element_type=jnp.float32)  # (D, TN)
    q_ref[0] = q.astype(q_ref.dtype)

    # SSE from already-available quantities: ||q - x||^2 = min_d + ||x||^2 per column.
    xsq = jnp.sum(x32 * x32, axis=0, keepdims=True)                      # (1, TN)
    err = jnp.maximum(min_d + xsq, 0.0)                                  # (1, TN)
    if needs_mask:
        # Zero the contribution of padded spatial columns.
        col0 = pl.program_id(spatial_axis) * tile_n
        lane = jax.lax.broadcasted_iota(jnp.int32, err.shape, 1)
        err = jnp.where(lane + col0 < hw, err, 0.0)
    sse_ref[...] = jnp.sum(err) + jnp.zeros_like(sse_ref)


def _pick_tile(hw, target):
    """Lane tile: multiple of 128, <= target. Prefer exact divisors of hw; else pad."""
    target = max(128, (target // 128) * 128)
    t = min(target, (hw // 128) * 128)
    while t >= 128:
        if hw % t == 0:
            return t                      # exact divisor -> no padding needed
        t -= 128
    # No 128-multiple divisor <= target: caller pads hw up to a multiple of the tile.
    return min(target, ((hw + 127) // 128) * 128)


@functools.partial(
    jax.jit, static_argnames=("commitment_cost", "tile_n", "use_bf16_scores"))
def vq_forward(x_nchw, codebook, commitment_cost=0.25, tile_n=512,
               use_bf16_scores=False):
    """x_nchw: (B, D, H, W); codebook: (K, D). Returns (c_loss, quantized NCHW)."""
    B, D, H, W = x_nchw.shape
    K, D2 = codebook.shape
    assert D == D2, "input channel dim must equal embedding_dim"
    HW = H * W

    tn = _pick_tile(HW, tile_n)
    grid_s = (HW + tn - 1) // tn
    hw_pad = grid_s * tn
    needs_mask = hw_pad != HW

    # Free reshape: NCHW is already (B, D, H*W) row-major. No transposes, no astype.
    x = x_nchw.reshape(B, D, HW)
    if needs_mask:
        x = jnp.pad(x, ((0, 0), (0, 0), (0, hw_pad - HW)))

    cb32 = codebook.astype(jnp.float32)
    scores_dtype = jnp.bfloat16 if use_bf16_scores else jnp.float32
    e2kd = (-2.0 * cb32).astype(scores_dtype)                # (K, D), -2 folded in
    e_dk = cb32.T                                            # (D, K), one-time transpose
    e_sq = jnp.sum(cb32 * cb32, axis=-1, keepdims=True)      # (K, 1)

    # Put the larger parallel axis first so v7x's 2 TensorCores always get work
    # (e.g. B=1 relies on the spatial axis for the core split).
    spatial_major = grid_s >= B
    if spatial_major:
        grid = (grid_s, B)
        xq_map = lambda i, b: (b, 0, i)
        sse_map = lambda i, b: (b, i, 0, 0)
        spatial_axis = 0
    else:
        grid = (B, grid_s)
        xq_map = lambda b, i: (b, 0, i)
        sse_map = lambda b, i: (b, i, 0, 0)
        spatial_axis = 1
    const_map = lambda *_: (0, 0)

    kernel = functools.partial(
        _vq_kernel, needs_mask=needs_mask, hw=HW, tile_n=tn,
        spatial_axis=spatial_axis)

    q, sse_parts = pl.pallas_call(
        kernel,
        out_shape=(
            jax.ShapeDtypeStruct((B, D, hw_pad), x_nchw.dtype),
            jax.ShapeDtypeStruct((B, grid_s, 1, 1), jnp.float32),
        ),
        grid_spec=pltpu.PrefetchScalarGridSpec(
            num_scalar_prefetch=0,
            grid=grid,
            in_specs=[
                pl.BlockSpec((1, D, tn), xq_map),     # x columns
                pl.BlockSpec((K, D), const_map),      # -2 * codebook
                pl.BlockSpec((D, K), const_map),      # codebook^T (gather operand)
                pl.BlockSpec((K, 1), const_map),      # ||e||^2
            ],
            out_specs=[
                pl.BlockSpec((1, D, tn), xq_map),         # quantized columns
                pl.BlockSpec((1, 1, 1, 1), sse_map),      # per-tile SSE
            ],
        ),
        compiler_params=pltpu.CompilerParams(
            dimension_semantics=("parallel", "parallel"),
            # Actual live set is well under this even at TN=1024; 24 MiB leaves
            # headroom on v7x's 64 MiB VMEM and is fine on v5e/v6e.
            vmem_limit_bytes=24 * 1024 * 1024,
        ),
    )(x, e2kd, e_dk, e_sq)

    mse = jnp.sum(sse_parts) / jnp.float32(B * HW * D)
    # forward: q_latent_loss == e_latent_loss == mse (detach only affects grads)
    c_loss = (1.0 + commitment_cost) * mse

    if needs_mask:
        q = q[:, :, :HW]
    quantized = q.reshape(B, D, H, W)   # straight-through forward value, already NCHW
    return c_loss, quantized


def _reference(x_nchw, codebook, commitment_cost):
    """Pure-JAX reference of the PyTorch forward."""
    B, D, H, W = x_nchw.shape
    x_nhwc = jnp.transpose(x_nchw.astype(jnp.float32), (0, 2, 3, 1))
    flat = x_nhwc.reshape(-1, D)
    cb = codebook.astype(jnp.float32)
    d2 = (jnp.sum(flat * flat, axis=-1, keepdims=True)
          - 2.0 * flat @ cb.T
          + jnp.sum(cb * cb, axis=-1)[None, :])
    idx = jnp.argmin(d2, axis=-1)
    q = cb[idx].reshape(B, H, W, D)
    mse = jnp.mean((q - x_nhwc) ** 2)
    loss = (1.0 + commitment_cost) * mse
    return loss, jnp.transpose(q, (0, 3, 1, 2))


if __name__ == "__main__":
    num_embeddings = 512
    embedding_dim = 64
    commitment_cost = 0.25

    key = jax.random.PRNGKey(0)
    k_emb, k_x1, k_x2 = jax.random.split(key, 3)

    # nn.Embedding init: uniform(-1/num_embeddings, 1/num_embeddings)
    codebook = jax.random.uniform(
        k_emb, (num_embeddings, embedding_dim),
        minval=-1.0 / num_embeddings, maxval=1.0 / num_embeddings,
        dtype=jnp.float32)

    # Case 1: B=2, C=64, H=W=16 (HW=256, exact 128-multiple tile, batch-major grid)
    B, H, W = 2, 16, 16
    x = jax.random.normal(k_x1, (B, embedding_dim, H, W), dtype=jnp.float32)
    c_loss, quantized = vq_forward(x, codebook, commitment_cost=commitment_cost)
    jax.block_until_ready((c_loss, quantized))

    loss_ref, q_ref = _reference(x, codebook, commitment_cost)
    assert quantized.shape == (B, embedding_dim, H, W)
    assert quantized.dtype == x.dtype
    assert c_loss.shape == ()
    assert jnp.allclose(c_loss, loss_ref, rtol=1e-4, atol=1e-6)
    assert jnp.allclose(quantized, q_ref, rtol=1e-4, atol=1e-5)

    # Case 2: B=1, H=W=10 (HW=100 -> padded to one 128-wide tile, spatial-major grid)
    x2 = jax.random.normal(k_x2, (1, embedding_dim, 10, 10), dtype=jnp.float32)
    c_loss2, quantized2 = vq_forward(x2, codebook, commitment_cost=commitment_cost)
    jax.block_until_ready((c_loss2, quantized2))

    loss_ref2, q_ref2 = _reference(x2, codebook, commitment_cost)
    assert quantized2.shape == (1, embedding_dim, 10, 10)
    assert jnp.allclose(c_loss2, loss_ref2, rtol=1e-4, atol=1e-6)
    assert jnp.allclose(quantized2, q_ref2, rtol=1e-4, atol=1e-5)

    print("KERNEL_OK")
</pallas_src>

<mosaic_0001>
module attributes {stable_mosaic.version = 11 : i64} {
  func.func @_vq_kernel(%arg0: i32, %arg1: i32, %arg2: memref<1x64x256xf32, #tpu.memory_space<vmem>>, %arg3: memref<512x64xf32, #tpu.memory_space<vmem>>, %arg4: memref<64x512xf32, #tpu.memory_space<vmem>>, %arg5: memref<512x1xf32, #tpu.memory_space<vmem>>, %arg6: memref<1x64x256xf32, #tpu.memory_space<vmem>>, %arg7: memref<1x1x1x1xf32, #tpu.memory_space<vmem>>) attributes {dimension_semantics = [#tpu.dimension_semantics<parallel>, #tpu.dimension_semantics<parallel>], iteration_bounds = array<i64: 2, 1>, scalar_prefetch = 0 : i64, scratch_operands = 0 : i64, tpu.core_type = #tpu.core_type<tc>, window_params = [{transform_indices = @transform_0, window_bounds = array<i64: 1, 64, 256>}, {pipeline_mode = #tpu.pipeline_mode<synchronous>, transform_indices = @transform_1, window_bounds = array<i64: 512, 64>}, {pipeline_mode = #tpu.pipeline_mode<synchronous>, transform_indices = @transform_2, window_bounds = array<i64: 64, 512>}, {pipeline_mode = #tpu.pipeline_mode<synchronous>, transform_indices = @transform_3, window_bounds = array<i64: 512, 1>}, {transform_indices = @transform_4, window_bounds = array<i64: 1, 64, 256>}, {transform_indices = @transform_5, window_bounds = array<i64: 1, 1, 1, 1>}]} {
    %c0 = arith.constant 0 : index
    %c0_0 = arith.constant 0 : index
    %c0_1 = arith.constant 0 : index
    %0 = vector.load %arg2[%c0, %c0_0, %c0_1] : memref<1x64x256xf32, #tpu.memory_space<vmem>>, vector<1x64x256xf32>
    %1 = vector.shape_cast %0 : vector<1x64x256xf32> to vector<64x256xf32>
    %c0_2 = arith.constant 0 : index
    %c0_3 = arith.constant 0 : index
    %2 = vector.load %arg3[%c0_2, %c0_3] : memref<512x64xf32, #tpu.memory_space<vmem>>, vector<512x64xf32>
    %cst = arith.constant dense<0.000000e+00> : vector<512x256xf32>
    %3 = tpu.matmul %2, %1, %cst {dimension_numbers = #tpu.dot_dimension_numbers<[1], [0], [0], [1], [0, 0, 1, 1], [], []>} : vector<512x64xf32>, vector<64x256xf32>, vector<512x256xf32> -> vector<512x256xf32>
    %c0_4 = arith.constant 0 : index
    %c0_5 = arith.constant 0 : index
    %4 = vector.load %arg5[%c0_4, %c0_5] : memref<512x1xf32, #tpu.memory_space<vmem>>, vector<512x1xf32>
    %5 = vector.broadcast %4 : vector<512x1xf32> to vector<512x256xf32>
    %6 = arith.addf %3, %5 : vector<512x256xf32>
    %7 = tpu.iota {dimensions = array<i32: 0>} : vector<512x256xi32>
    %cst_6 = arith.constant dense<0x7F800000> : vector<256xf32>
    %8 = vector.multi_reduction <minimumf>, %6, %cst_6 [0] : vector<512x256xf32> to vector<256xf32>
    %9 = vector.shape_cast %8 : vector<256xf32> to vector<1x256xf32>
    %10 = vector.broadcast %9 : vector<1x256xf32> to vector<512x256xf32>
    %11 = arith.cmpf ole, %6, %10 : vector<512x256xf32>
    %c512_i32 = arith.constant 512 : i32
    %12 = vector.broadcast %c512_i32 : i32 to vector<512x256xi32>
    %13 = arith.select %11, %7, %12 : vector<512x256xi1>, vector<512x256xi32>
    %cst_7 = arith.constant dense<2147483647> : vector<256xi32>
    %14 = vector.multi_reduction <minsi>, %13, %cst_7 [0] : vector<512x256xi32> to vector<256xi32>
    %15 = vector.shape_cast %14 : vector<256xi32> to vector<1x256xi32>
    %16 = vector.broadcast %15 : vector<1x256xi32> to vector<512x256xi32>
    %17 = arith.cmpi eq, %13, %16 : vector<512x256xi32>
    %18 = arith.extui %17 : vector<512x256xi1> to vector<512x256xi32>
    %19 = arith.sitofp %18 : vector<512x256xi32> to vector<512x256xf32>
    %c0_8 = arith.constant 0 : index
    %c0_9 = arith.constant 0 : index
    %20 = vector.load %arg4[%c0_8, %c0_9] : memref<64x512xf32, #tpu.memory_space<vmem>>, vector<64x512xf32>
    %cst_10 = arith.constant dense<0.000000e+00> : vector<64x256xf32>
    %21 = tpu.matmul %20, %19, %cst_10 {dimension_numbers = #tpu.dot_dimension_numbers<[1], [0], [0], [1], [0, 0, 1, 1], [], []>} : vector<64x512xf32>, vector<512x256xf32>, vector<64x256xf32> -> vector<64x256xf32>
    %c0_11 = arith.constant 0 : index
    %c0_12 = arith.constant 0 : index
    %c0_13 = arith.constant 0 : index
    %22 = vector.load %arg6[%c0_11, %c0_12, %c0_13] : memref<1x64x256xf32, #tpu.memory_space<vmem>>, vector<1x64x256xf32>
    %23 = vector.shape_cast %22 : vector<1x64x256xf32> to vector<64x256xf32>
    %24 = vector.shape_cast %21 : vector<64x256xf32> to vector<1x64x256xf32>
    tpu.vector_store %arg6[%c0_11, %c0_12, %c0_13], %24 {strides = array<i32>} : memref<1x64x256xf32, #tpu.memory_space<vmem>>, vector<1x64x256xf32>,
    %25 = arith.mulf %1, %1 : vector<64x256xf32>
    %cst_14 = arith.constant dense<0.000000e+00> : vector<256xf32>
    %26 = vector.multi_reduction <add>, %25, %cst_14 [0] : vector<64x256xf32> to vector<256xf32>
    %27 = vector.shape_cast %26 : vector<256xf32> to vector<1x256xf32>
    %28 = arith.addf %9, %27 : vector<1x256xf32>
    %cst_15 = arith.constant 0.000000e+00 : f32
    %29 = vector.broadcast %cst_15 : f32 to vector<1x256xf32>
    %30 = arith.maximumf %28, %29 : vector<1x256xf32>
    %31 = vector.shape_cast %30 : vector<1x256xf32> to vector<1x1x256xf32>
    %cst_16 = arith.constant dense<0.000000e+00> : vector<1xf32>
    %32 = vector.multi_reduction <add>, %31, %cst_16 [1, 2] : vector<1x1x256xf32> to vector<1xf32>
    %33 = vector.shape_cast %32 : vector<1xf32> to vector<1x1x1xf32>
    %34 = vector.extract %33[0, 0, 0] : f32 from vector<1x1x1xf32>
    %cst_17 = arith.constant 0.000000e+00 : f32
    %35 = vector.broadcast %cst_17 : f32 to vector<1x1x1x1xf32>
    %36 = vector.broadcast %34 : f32 to vector<1x1x1x1xf32>
    %37 = arith.addf %36, %35 : vector<1x1x1x1xf32>
    %c0_18 = arith.constant 0 : index
    %c0_19 = arith.constant 0 : index
    %c0_20 = arith.constant 0 : index
    %c0_21 = arith.constant 0 : index
    %38 = vector.load %arg7[%c0_18, %c0_19, %c0_20, %c0_21] : memref<1x1x1x1xf32, #tpu.memory_space<vmem>>, vector<1x1x1x1xf32>
    tpu.vector_store %arg7[%c0_18, %c0_19, %c0_20, %c0_21], %37 {strides = array<i32>} : memref<1x1x1x1xf32, #tpu.memory_space<vmem>>, vector<1x1x1x1xf32>,
    return
  }
  func.func @transform_0(%arg0: i32, %arg1: i32) -> (i32, i32, i32) {
    %c0_i32 = arith.constant 0 : i32
    %c0_i32_0 = arith.constant 0 : i32
    return %arg0, %c0_i32, %arg1 : i32, i32, i32
  }
  func.func @transform_1(%arg0: i32, %arg1: i32) -> (i32, i32) {
    %c0_i32 = arith.constant 0 : i32
    %c0_i32_0 = arith.constant 0 : i32
    %c0_i32_1 = arith.constant 0 : i32
    return %c0_i32, %c0_i32_0 : i32, i32
  }
  func.func @transform_2(%arg0: i32, %arg1: i32) -> (i32, i32) {
    %c0_i32 = arith.constant 0 : i32
    %c0_i32_0 = arith.constant 0 : i32
    %c0_i32_1 = arith.constant 0 : i32
    return %c0_i32, %c0_i32_0 : i32, i32
  }
  func.func @transform_3(%arg0: i32, %arg1: i32) -> (i32, i32) {
    %c0_i32 = arith.constant 0 : i32
    %c0_i32_0 = arith.constant 0 : i32
    %c0_i32_1 = arith.constant 0 : i32
    return %c0_i32, %c0_i32_0 : i32, i32
  }
  func.func @transform_4(%arg0: i32, %arg1: i32) -> (i32, i32, i32) {
    %c0_i32 = arith.constant 0 : i32
    %c0_i32_0 = arith.constant 0 : i32
    return %arg0, %c0_i32, %arg1 : i32, i32, i32
  }
  func.func @transform_5(%arg0: i32, %arg1: i32) -> (i32, i32, i32, i32) {
    %c0_i32 = arith.constant 0 : i32
    %c0_i32_0 = arith.constant 0 : i32
    %c0_i32_1 = arith.constant 0 : i32
    return %arg0, %arg1, %c0_i32, %c0_i32_0 : i32, i32, i32, i32
  }
}

</mosaic_0001>

<llo_original>
// kernel: vq_forward.1
$region0: #{vq_forward.1}
  #allocation0 [shape = 'u32[]', space=smem, size = 0x4, offset = 0x4, fixed_abs, tag = 'smem constant byte address 0x4 - core index']
  #allocation1 [shape = 'u32[72,128]{1,0:T(1,128)}', space=vmem, size = 0x9000, scoped, tag = 'internal scratch']
  %s0 = inlined_call_operand.vmem [shape: f32[2,64,256], index: 0, kind: input, shape index: {}]
  %s1 = inlined_call_operand.vmem [shape: f32[512,64], index: 1, kind: input, shape index: {}]
  %s2 = inlined_call_operand.vmem [shape: f32[64,512], index: 2, kind: input, shape index: {}]
  %s3 = inlined_call_operand.vmem [shape: f32[512,1], index: 3, kind: input, shape index: {}]
  %s4 = inlined_call_operand.vmem [shape: f32[2,64,256], index: 4, kind: output, shape index: {0}]
  %s5 = inlined_call_operand.vmem [shape: f32[2,1,1,1], index: 5, kind: output, shape index: {1}]
  %6 = xla_tuple %s4, %s5
  %s7 = sld [smem:[#allocation0]]
  $region57: #{vq_forward.1} parent=0
    _
  %s9 = ssub.s32 1, %s7
  %s10 = scalar_select 0, %s9, %s7
  loop: start=0, step=1, limit=4
  $region2: #{vq_forward.1} parent=0 // loop_pre_header
    _
  $region3: #{vq_forward.1} parent=0 // loop_header
    %s12 = sphi 0, %s16
    %p13 = scmp.ge.s32.totalorder %s12, 4
    %s19 = sphi 0, %s31
    %s20 = sphi 0, %s27
    %s21 = sphi 0, %s19
    %s22 = sphi 0, %s20
    %s23 = sphi 0, %s21
    %s24 = sphi 0, %s22
    %s36 = sphi 0, %s38
    %s39 = sphi 0, %s36
    %s40 = sphi 0, %s39
    %s56 = sphi 0, %s40
    %s60 = sphi 0, %s60
    %s62 = sphi 0, %s60
    %s63 = sphi 0, %s62
    %s77 = sphi 0, %s63
    %s81 = sphi 0, %s81
    %s83 = sphi 0, %s81
    %s84 = sphi 0, %s83
    %s98 = sphi 0, %s84
    %s102 = sphi 0, %s102
    %s104 = sphi 0, %s102
    %s105 = sphi 0, %s104
    %s119 = sphi 0, %s105
    %s127 = sphi 0, %s129
    %s130 = sphi 0, %s127
    %s131 = sphi 0, %s130
    %s147 = sphi 0, %s131
    %s155 = sphi 0, %s157
    %s158 = sphi 0, %s155
    %s159 = sphi 0, %s158
    %s175 = sphi 0, %s159
  $region4: #{vq_forward.1} parent=0 // loop_header_branch
    %15 = sbr.rel (%p13) target = $region8
  $region5: #{vq_forward.1} parent=0 // loop_body
    %s17 = ssub.s32 %s12, 1
    %s18 = ssub.s32 %s12, 2
    %s25 = sadd.s32 1, %s20
    %p26 = scmp.ge.s32.totalorder %s25, 1
    %s27 = scalar_select %p26, 0, %s25
    %s28 = sadd.s32 1, %s19
    %s29 = scalar_select %p26, %s28, %s19
    %p30 = scmp.ge.s32.totalorder %s29, 2
    %s31 = scalar_select %p30, 0, %s29
    %s32 = ssub.s32 %s19, %s31
    %s33 = ssub.s32 %s20, %s27
    %s34 = sor.u32 %s32, %s33
    %p35 = scmp.eq.s32.totalorder %s34, 0
    %s37 = sadd.s32 %s36, 1
    %s38 = scalar_select %p35, %s36, %s37
    %p41 = pneg %p35
    %p42 = scmp.eq.s32.totalorder %s12, 1
    %p43 = por %p41, %p42
    %p44 = scmp.ne.s32.totalorder %s36, %s39
    %p45 = scmp.eq.s32.totalorder %s12, 0
    %p46 = por %p44, %p45
    %p47 = scmp.ne.s32.totalorder %s36, %s39
    %p48 = scmp.eq.s32.totalorder %s17, 1
    %p49 = por %p47, %p48
    %p50 = scmp.ne.s32.totalorder %s39, %s40
    %p51 = scmp.eq.s32.totalorder %s17, 0
    %p52 = por %p50, %p51
    %p53 = scmp.ne.s32.totalorder %s39, %s40
    %p54 = scmp.eq.s32.totalorder %s18, 1
    %p55 = por %p53, %p54
    %p57 = scmp.ne.s32.totalorder %s40, %s56
    %p58 = scmp.eq.s32.totalorder %s18, 0
    %p59 = por %p57, %p58
    %s61 = sadd.s32 %s60, 1
    %p64 = scmp.eq.s32.totalorder %s12, 1
    %p65 = scmp.ne.s32.totalorder %s60, %s62
    %p66 = scmp.eq.s32.totalorder %s12, 0
    %p67 = por %p65, %p66
    %p68 = scmp.ne.s32.totalorder %s60, %s62
    %p69 = scmp.eq.s32.totalorder %s17, 1
    %p70 = por %p68, %p69
    %p71 = scmp.ne.s32.totalorder %s62, %s63
    %p72 = scmp.eq.s32.totalorder %s17, 0
    %p73 = por %p71, %p72
    %p74 = scmp.ne.s32.totalorder %s62, %s63
    %p75 = scmp.eq.s32.totalorder %s18, 1
    %p76 = por %p74, %p75
    %p78 = scmp.ne.s32.totalorder %s63, %s77
    %p79 = scmp.eq.s32.totalorder %s18, 0
    %p80 = por %p78, %p79
    %s82 = sadd.s32 %s81, 1
    %p85 = scmp.eq.s32.totalorder %s12, 1
    %p86 = scmp.ne.s32.totalorder %s81, %s83
    %p87 = scmp.eq.s32.totalorder %s12, 0
    %p88 = por %p86, %p87
    %p89 = scmp.ne.s32.totalorder %s81, %s83
    %p90 = scmp.eq.s32.totalorder %s17, 1
    %p91 = por %p89, %p90
    %p92 = scmp.ne.s32.totalorder %s83, %s84
    %p93 = scmp.eq.s32.totalorder %s17, 0
    %p94 = por %p92, %p93
    %p95 = scmp.ne.s32.totalorder %s83, %s84
    %p96 = scmp.eq.s32.totalorder %s18, 1
    %p97 = por %p95, %p96
    %p99 = scmp.ne.s32.totalorder %s84, %s98
    %p100 = scmp.eq.s32.totalorder %s18, 0
    %p101 = por %p99, %p100
    %s103 = sadd.s32 %s102, 1
    %p106 = scmp.eq.s32.totalorder %s12, 1
    %p107 = scmp.ne.s32.totalorder %s102, %s104
    %p108 = scmp.eq.s32.totalorder %s12, 0
    %p109 = por %p107, %p108
    %p110 = scmp.ne.s32.totalorder %s102, %s104
    %p111 = scmp.eq.s32.totalorder %s17, 1
    %p112 = por %p110, %p111
    %p113 = scmp.ne.s32.totalorder %s104, %s105
    %p114 = scmp.eq.s32.totalorder %s17, 0
    %p115 = por %p113, %p114
    %p116 = scmp.ne.s32.totalorder %s104, %s105
    %p117 = scmp.eq.s32.totalorder %s18, 1
    %p118 = por %p116, %p117
    %p120 = scmp.ne.s32.totalorder %s105, %s119
    %p121 = scmp.eq.s32.totalorder %s18, 0
    %p122 = por %p120, %p121
    %s123 = ssub.s32 %s19, %s31
    %s124 = ssub.s32 %s20, %s27
    %s125 = sor.u32 %s123, %s124
    %p126 = scmp.eq.s32.totalorder %s125, 0
    %s128 = sadd.s32 %s127, 1
    %s129 = scalar_select %p126, %s127, %s128
    %p132 = pneg %p126
    %p133 = scmp.eq.s32.totalorder %s12, 1
    %p134 = por %p132, %p133
    %p135 = scmp.ne.s32.totalorder %s127, %s130
    %p136 = scmp.eq.s32.totalorder %s12, 0
    %p137 = por %p135, %p136
    %p138 = scmp.ne.s32.totalorder %s127, %s130
    %p139 = scmp.eq.s32.totalorder %s17, 1
    %p140 = por %p138, %p139
    %p141 = scmp.ne.s32.totalorder %s130, %s131
    %p142 = scmp.eq.s32.totalorder %s17, 0
    %p143 = por %p141, %p142
    %p144 = scmp.ne.s32.totalorder %s130, %s131
    %p145 = scmp.eq.s32.totalorder %s18, 1
    %p146 = por %p144, %p145
    %p148 = scmp.ne.s32.totalorder %s131, %s147
    %p149 = scmp.eq.s32.totalorder %s18, 0
    %p150 = por %p148, %p149
    %s151 = ssub.s32 %s19, %s31
    %s152 = ssub.s32 %s20, %s27
    %s153 = sor.u32 %s151, %s152
    %p154 = scmp.eq.s32.totalorder %s153, 0
    %s156 = sadd.s32 %s155, 1
    %s157 = scalar_select %p154, %s155, %s156
    %p160 = pneg %p154
    %p161 = scmp.eq.s32.totalorder %s12, 1
    %p162 = por %p160, %p161
    %p163 = scmp.ne.s32.totalorder %s155, %s158
    %p164 = scmp.eq.s32.totalorder %s12, 0
    %p165 = por %p163, %p164
    %p166 = scmp.ne.s32.totalorder %s155, %s158
    %p167 = scmp.eq.s32.totalorder %s17, 1
    %p168 = por %p166, %p167
    %p169 = scmp.ne.s32.totalorder %s158, %s159
    %p170 = scmp.eq.s32.totalorder %s17, 0
    %p171 = por %p169, %p170
    %p172 = scmp.ne.s32.totalorder %s158, %s159
    %p173 = scmp.eq.s32.totalorder %s18, 1
    %p174 = por %p172, %p173
    %p176 = scmp.ne.s32.totalorder %s159, %s175
    %p177 = scmp.eq.s32.totalorder %s18, 0
    %p178 = por %p176, %p177
    %p179 = scmp.le.s32.totalorder 1, %s12
    %p180 = scmp.lt.s32.totalorder %s12, 3
    %p181 = pnand %p179, %p180
    %p182 = pneg %p181
    // Predicated region
    $region9: #{vq_forward.1} parent=5 // pred_check
      _
    $region10: #{vq_forward.1} parent=5 // pred_check_branch
      %184 = sbr.rel (%p181) target = $region12
    $region11: #{vq_forward.1} parent=5 // pred_region
      %s185 = ssub.s32 %s12, 1
      // Predicated region
      $region13: #{vq_forward.1} parent=11 // pred_check
        %p186 = pneg %p73
      $region14: #{vq_forward.1} parent=11 // pred_check_branch
        %188 = sbr.rel (%p186) target = $region16
      $region15: #{vq_forward.1} parent=11 // pred_region
        _
      $region16: #{vq_forward.1} parent=11 // pred_fallthru
        _
      // Predicated region
      $region17: #{vq_forward.1} parent=11 // pred_check
        %p189 = pneg %p94
      $region18: #{vq_forward.1} parent=11 // pred_check_branch
        %191 = sbr.rel (%p189) target = $region20
      $region19: #{vq_forward.1} parent=11 // pred_region
        _
      $region20: #{vq_forward.1} parent=11 // pred_fallthru
        _
      // Predicated region
      $region21: #{vq_forward.1} parent=11 // pred_check
        %p192 = pneg %p115
      $region22: #{vq_forward.1} parent=11 // pred_check_branch
        %194 = sbr.rel (%p192) target = $region24
      $region23: #{vq_forward.1} parent=11 // pred_region
        _
      $region24: #{vq_forward.1} parent=11 // pred_fallthru
        _
    $region12: #{vq_forward.1} parent=5 // pred_fallthru
      _
    %p195 = scmp.lt.s32.totalorder %s12, 2
    // Predicated region
    $region25: #{vq_forward.1} parent=5 // pred_check
      %p196 = pneg %p195
    $region26: #{vq_forward.1} parent=5 // pred_check_branch
      %198 = sbr.rel (%p196) target = $region28
    $region27: #{vq_forward.1} parent=5 // pred_region
      // Predicated region
      $region29: #{vq_forward.1} parent=27 // pred_check
        %p199 = pneg %p46
      $region30: #{vq_forward.1} parent=27 // pred_check_branch
        %201 = sbr.rel (%p199) target = $region32
      $region31: #{vq_forward.1} parent=27 // pred_region
        %s202 = smul.u32 2, %s20
        %p203 = scmp.lt.s32.totalorder %s19, 1
        %s204 = scalar_select %p203, %s19, 1
        %p205 = scmp.lt.s32.totalorder %s202, 1
        %s206 = scalar_select %p205, %s202, 1
        %s207 = smul.addr %s204, 16
        %s208 = sadd.s32 %s206, %s207
        %s209 = smul.addr %s208, 8
        %s210 = scalar_lea.vmem %s0, %s209
        %s211 = smul.u32 2, %s20
      $region32: #{vq_forward.1} parent=27 // pred_fallthru
        _
    $region28: #{vq_forward.1} parent=5 // pred_fallthru
      _
    %p212 = scmp.le.s32.totalorder 1, %s12
    %p213 = scmp.lt.s32.totalorder %s12, 3
    %p214 = pnand %p212, %p213
    %p215 = pneg %p214
    // Predicated region
    $region33: #{vq_forward.1} parent=5 // pred_check
      _
    $region34: #{vq_forward.1} parent=5 // pred_check_branch
      %217 = sbr.rel (%p214) target = $region36
    $region35: #{vq_forward.1} parent=5 // pred_region
      %s218 = ssub.s32 %s12, 1
      %s219 = smul.u32 2, %s22
      %p220 = scmp.lt.s32.totalorder %s21, 1
      %s221 = scalar_select %p220, %s21, 1
      %p222 = scmp.lt.s32.totalorder %s219, 1
      %s223 = scalar_select %p222, %s219, 1
      %s224 = smul.addr %s221, 16
      %s225 = sadd.s32 %s223, %s224
      %s226 = smul.addr %s225, 8
      %s227 = scalar_lea.vmem %s0, %s226
      %p228 = pneg %p52
      %p229 = pneg %p49
      %p230 = pneg %p73
      %p231 = pneg %p70
      %p232 = pneg %p94
      %p233 = pneg %p91
      %p234 = pneg %p115
      %p235 = pneg %p112
      %p236 = pneg %p143
      %p237 = pneg %p140
      %s238 = smul.u32 2, %s22
      %p239 = scmp.lt.s32.totalorder %s21, 1
      %s240 = scalar_select %p239, %s21, 1
      %p241 = scmp.lt.s32.totalorder %s238, 1
      %s242 = scalar_select %p241, %s238, 1
      %s243 = smul.addr %s240, 16
      %s244 = sadd.s32 %s242, %s243
      %s245 = smul.addr %s244, 8
      %s246 = scalar_lea.vmem %s4, %s245
      %p247 = pneg %p171
      %p248 = pneg %p168
      %p249 = scmp.lt.s32.totalorder %s21, 1
      %s250 = scalar_select %p249, %s21, 1
      %p251 = scmp.lt.s32.totalorder %s22, 0
      %s252 = scalar_select %p251, %s22, 0
      %s253 = sadd.s32 %s252, %s250
      %s254 = scalar_lea.vmem %s5, %s253
      %s255 = smul.u32 2, %s22
      %p256 = scmp.lt.s32.totalorder %s21, 1
      %s257 = scalar_select %p256, %s21, 1
      %p258 = scmp.lt.s32.totalorder %s255, 1
      %s259 = scalar_select %p258, %s255, 1
      %s260 = smul.addr %s257, 16
      %s261 = sadd.s32 %s259, %s260
      %s262 = smul.addr %s261, 8
      %s263 = scalar_lea.vmem %s0, %s262
      %s264 = smul.u32 2, %s22
      %s265 = smul.u32 2, %s22
      %p266 = scmp.lt.s32.totalorder %s21, 1
      %s267 = scalar_select %p266, %s21, 1
      %p268 = scmp.lt.s32.totalorder %s265, 1
      %s269 = scalar_select %p268, %s265, 1
      %s270 = smul.addr %s267, 16
      %s271 = sadd.s32 %s269, %s270
      %s272 = smul.addr %s271, 8
      %s273 = scalar_lea.vmem %s4, %s272
      %s274 = smul.u32 2, %s22
      %p275 = scmp.lt.s32.totalorder %s21, 1
      %s276 = scalar_select %p275, %s21, 1
      %p277 = scmp.lt.s32.totalorder %s22, 0
      %s278 = scalar_select %p277, %s22, 0
      %s279 = sadd.s32 %s278, %s276
      %s280 = scalar_lea.vmem %s5, %s279
      %v281 = vld [vmem:[%s263] sm:$0xff]
      %v282 = vld [vmem:[%s263 + $0x8] sm:$0xff]
      %v283 = vld [vmem:[%s263 + $0x10] sm:$0xff]
      %v284 = vld [vmem:[%s263 + $0x18] sm:$0xff]
      %v285 = vld [vmem:[%s263 + $0x20] sm:$0xff]
      %v286 = vld [vmem:[%s263 + $0x28] sm:$0xff]
      %v287 = vld [vmem:[%s263 + $0x30] sm:$0xff]
      %v288 = vld [vmem:[%s263 + $0x38] sm:$0xff]
      %v289 = vld [vmem:[%s263 + $0x40] sm:$0xff]
      %v290 = vld [vmem:[%s263 + $0x48] sm:$0xff]
      %v291 = vld [vmem:[%s263 + $0x50] sm:$0xff]
      %v292 = vld [vmem:[%s263 + $0x58] sm:$0xff]
      %v293 = vld [vmem:[%s263 + $0x60] sm:$0xff]
      %v294 = vld [vmem:[%s263 + $0x68] sm:$0xff]
      %v295 = vld [vmem:[%s263 + $0x70] sm:$0xff]
      %v296 = vld [vmem:[%s263 + $0x78] sm:$0xff]
      %v297 = vld [vmem:[%s1] sm:$0xff]
      %v298 = vld [vmem:[%s1 + $0x8] sm:$0xff]
      %v299 = vld [vmem:[%s1 + $0x10] sm:$0xff]
      %v300 = vld [vmem:[%s1 + $0x18] sm:$0xff]
      %v301 = vld [vmem:[%s1 + $0x20] sm:$0xff]
      %v302 = vld [vmem:[%s1 + $0x28] sm:$0xff]
      %v303 = vld [vmem:[%s1 + $0x30] sm:$0xff]
      %v304 = vld [vmem:[%s1 + $0x38] sm:$0xff]
      %v305 = vld [vmem:[%s1 + $0x40] sm:$0xff]
      %v306 = vld [vmem:[%s1 + $0x48] sm:$0xff]
      %v307 = vld [vmem:[%s1 + $0x50] sm:$0xff]
      %v308 = vld [vmem:[%s1 + $0x58] sm:$0xff]
      %v309 = vld [vmem:[%s1 + $0x60] sm:$0xff]
      %v310 = vld [vmem:[%s1 + $0x68] sm:$0xff]
      %v311 = vld [vmem:[%s1 + $0x70] sm:$0xff]
      %v312 = vld [vmem:[%s1 + $0x78] sm:$0xff]
      %v313 = vld [vmem:[%s1 + $0x80] sm:$0xff]
      %v314 = vld [vmem:[%s1 + $0x88] sm:$0xff]
      %v315 = vld [vmem:[%s1 + $0x90] sm:$0xff]
      %v316 = vld [vmem:[%s1 + $0x98] sm:$0xff]
      %v317 = vld [vmem:[%s1 + $0xa0] sm:$0xff]
      %v318 = vld [vmem:[%s1 + $0xa8] sm:$0xff]
      %v319 = vld [vmem:[%s1 + $0xb0] sm:$0xff]
      %v320 = vld [vmem:[%s1 + $0xb8] sm:$0xff]
      %v321 = vld [vmem:[%s1 + $0xc0] sm:$0xff]
      %v322 = vld [vmem:[%s1 + $0xc8] sm:$0xff]
      %v323 = vld [vmem:[%s1 + $0xd0] sm:$0xff]
      %v324 = vld [vmem:[%s1 + $0xd8] sm:$0xff]
      %v325 = vld [vmem:[%s1 + $0xe0] sm:$0xff]
      %v326 = vld [vmem:[%s1 + $0xe8] sm:$0xff]
      %v327 = vld [vmem:[%s1 + $0xf0] sm:$0xff]
      %v328 = vld [vmem:[%s1 + $0xf8] sm:$0xff]
      %v329 = vld [vmem:[%s1 + $0x100] sm:$0xff]
      %v330 = vld [vmem:[%s1 + $0x108] sm:$0xff]
      %v331 = vld [vmem:[%s1 + $0x110] sm:$0xff]
      %v332 = vld [vmem:[%s1 + $0x118] sm:$0xff]
      %v333 = vld [vmem:[%s1 + $0x120] sm:$0xff]
      %v334 = vld [vmem:[%s1 + $0x128] sm:$0xff]
      %v335 = vld [vmem:[%s1 + $0x130] sm:$0xff]
      %v336 = vld [vmem:[%s1 + $0x138] sm:$0xff]
      %v337 = vld [vmem:[%s1 + $0x140] sm:$0xff]
      %v338 = vld [vmem:[%s1 + $0x148] sm:$0xff]
      %v339 = vld [vmem:[%s1 + $0x150] sm:$0xff]
      %v340 = vld [vmem:[%s1 + $0x158] sm:$0xff]
      %v341 = vld [vmem:[%s1 + $0x160] sm:$0xff]
      %v342 = vld [vmem:[%s1 + $0x168] sm:$0xff]
      %v343 = vld [vmem:[%s1 + $0x170] sm:$0xff]
      %v344 = vld [vmem:[%s1 + $0x178] sm:$0xff]
      %v345 = vld [vmem:[%s1 + $0x180] sm:$0xff]
      %v346 = vld [vmem:[%s1 + $0x188] sm:$0xff]
      %v347 = vld [vmem:[%s1 + $0x190] sm:$0xff]
      %v348 = vld [vmem:[%s1 + $0x198] sm:$0xff]
      %v349 = vld [vmem:[%s1 + $0x1a0] sm:$0xff]
      %v350 = vld [vmem:[%s1 + $0x1a8] sm:$0xff]
      %v351 = vld [vmem:[%s1 + $0x1b0] sm:$0xff]
      %v352 = vld [vmem:[%s1 + $0x1b8] sm:$0xff]
      %v353 = vld [vmem:[%s1 + $0x1c0] sm:$0xff]
      %v354 = vld [vmem:[%s1 + $0x1c8] sm:$0xff]
      %v355 = vld [vmem:[%s1 + $0x1d0] sm:$0xff]
      %v356 = vld [vmem:[%s1 + $0x1d8] sm:$0xff]
      %v357 = vld [vmem:[%s1 + $0x1e0] sm:$0xff]
      %v358 = vld [vmem:[%s1 + $0x1e8] sm:$0xff]
      %v359 = vld [vmem:[%s1 + $0x1f0] sm:$0xff]
      %v360 = vld [vmem:[%s1 + $0x1f8] sm:$0xff]
      %v361 = vld [vmem:[%s3] sm:$0xff]
      %v362 = vld [vmem:[%s3 + $0x8] sm:$0xff]
      %v363 = vld [vmem:[%s3 + $0x10] sm:$0xff]
      %v364 = vld [vmem:[%s3 + $0x18] sm:$0xff]
      %v365 = vld [vmem:[%s3 + $0x20] sm:$0xff]
      %v366 = vld [vmem:[%s3 + $0x28] sm:$0xff]
      %v367 = vld [vmem:[%s3 + $0x30] sm:$0xff]
      %v368 = vld [vmem:[%s3 + $0x38] sm:$0xff]
      %v369 = vld [vmem:[%s3 + $0x40] sm:$0xff]
      %v370 = vld [vmem:[%s3 + $0x48] sm:$0xff]
      %v371 = vld [vmem:[%s3 + $0x50] sm:$0xff]
      %v372 = vld [vmem:[%s3 + $0x58] sm:$0xff]
      %v373 = vld [vmem:[%s3 + $0x60] sm:$0xff]
      %v374 = vld [vmem:[%s3 + $0x68] sm:$0xff]
      %v375 = vld [vmem:[%s3 + $0x70] sm:$0xff]
      %v376 = vld [vmem:[%s3 + $0x78] sm:$0xff]
      %v377 = vld [vmem:[%s3 + $0x80] sm:$0xff]
      %v378 = vld [vmem:[%s3 + $0x88] sm:$0xff]
      %v379 = vld [vmem:[%s3 + $0x90] sm:$0xff]
      %v380 = vld [vmem:[%s3 + $0x98] sm:$0xff]
      %v381 = vld [vmem:[%s3 + $0xa0] sm:$0xff]
      %v382 = vld [vmem:[%s3 + $0xa8] sm:$0xff]
      %v383 = vld [vmem:[%s3 + $0xb0] sm:$0xff]
      %v384 = vld [vmem:[%s3 + $0xb8] sm:$0xff]
      %v385 = vld [vmem:[%s3 + $0xc0] sm:$0xff]
      %v386 = vld [vmem:[%s3 + $0xc8] sm:$0xff]
      %v387 = vld [vmem:[%s3 + $0xd0] sm:$0xff]
      %v388 = vld [vmem:[%s3 + $0xd8] sm:$0xff]
      %v389 = vld [vmem:[%s3 + $0xe0] sm:$0xff]
      %v390 = vld [vmem:[%s3 + $0xe8] sm:$0xff]
      %v391 = vld [vmem:[%s3 + $0xf0] sm:$0xff]
      %v392 = vld [vmem:[%s3 + $0xf8] sm:$0xff]
      %v393 = vld [vmem:[%s3 + $0x100] sm:$0xff]
      %v394 = vld [vmem:[%s3 + $0x108] sm:$0xff]
      %v395 = vld [vmem:[%s3 + $0x110] sm:$0xff]
      %v396 = vld [vmem:[%s3 + $0x118] sm:$0xff]
      %v397 = vld [vmem:[%s3 + $0x120] sm:$0xff]
      %v398 = vld [vmem:[%s3 + $0x128] sm:$0xff]
      %v399 = vld [vmem:[%s3 + $0x130] sm:$0xff]
      %v400 = vld [vmem:[%s3 + $0x138] sm:$0xff]
      %v401 = vld [vmem:[%s3 + $0x140] sm:$0xff]
      %v402 = vld [vmem:[%s3 + $0x148] sm:$0xff]
      %v403 = vld [vmem:[%s3 + $0x150] sm:$0xff]
      %v404 = vld [vmem:[%s3 + $0x158] sm:$0xff]
      %v405 = vld [vmem:[%s3 + $0x160] sm:$0xff]
      %v406 = vld [vmem:[%s3 + $0x168] sm:$0xff]
      %v407 = vld [vmem:[%s3 + $0x170] sm:$0xff]
      %v408 = vld [vmem:[%s3 + $0x178] sm:$0xff]
      %v409 = vld [vmem:[%s3 + $0x180] sm:$0xff]
      %v410 = vld [vmem:[%s3 + $0x188] sm:$0xff]
      %v411 = vld [vmem:[%s3 + $0x190] sm:$0xff]
      %v412 = vld [vmem:[%s3 + $0x198] sm:$0xff]
      %v413 = vld [vmem:[%s3 + $0x1a0] sm:$0xff]
      %v414 = vld [vmem:[%s3 + $0x1a8] sm:$0xff]
      %v415 = vld [vmem:[%s3 + $0x1b0] sm:$0xff]
      %v416 = vld [vmem:[%s3 + $0x1b8] sm:$0xff]
      %v417 = vld [vmem:[%s3 + $0x1c0] sm:$0xff]
      %v418 = vld [vmem:[%s3 + $0x1c8] sm:$0xff]
      %v419 = vld [vmem:[%s3 + $0x1d0] sm:$0xff]
      %v420 = vld [vmem:[%s3 + $0x1d8] sm:$0xff]
      %v421 = vld [vmem:[%s3 + $0x1e0] sm:$0xff]
      %v422 = vld [vmem:[%s3 + $0x1e8] sm:$0xff]
      %v423 = vld [vmem:[%s3 + $0x1f0] sm:$0xff]
      %v424 = vld [vmem:[%s3 + $0x1f8] sm:$0xff]
      %426 = vset.pattern.permute.xlu0 0
      %427 = vperm.xlu0 %426, %v361
      %v428 = vpop.permute.xlu0 %427
      %431 = vset.pattern.permute.xlu0 0
      %432 = vperm.xlu0 %431, %v362
      %v433 = vpop.permute.xlu0 %432
      %436 = vset.pattern.permute.xlu0 0
      %437 = vperm.xlu0 %436, %v363
      %v438 = vpop.permute.xlu0 %437
      %441 = vset.pattern.permute.xlu0 0
      %442 = vperm.xlu0 %441, %v364
      %v443 = vpop.permute.xlu0 %442
      %446 = vset.pattern.permute.xlu0 0
      %447 = vperm.xlu0 %446, %v365
      %v448 = vpop.permute.xlu0 %447
      %451 = vset.pattern.permute.xlu0 0
      %452 = vperm.xlu0 %451, %v366
      %v453 = vpop.permute.xlu0 %452
      %456 = vset.pattern.permute.xlu0 0
      %457 = vperm.xlu0 %456, %v367
      %v458 = vpop.permute.xlu0 %457
      %461 = vset.pattern.permute.xlu0 0
      %462 = vperm.xlu0 %461, %v368
      %v463 = vpop.permute.xlu0 %462
      %466 = vset.pattern.permute.xlu0 0
      %467 = vperm.xlu0 %466, %v369
      %v468 = vpop.permute.xlu0 %467
      %471 = vset.pattern.permute.xlu0 0
      %472 = vperm.xlu0 %471, %v370
      %v473 = vpop.permute.xlu0 %472
      %476 = vset.pattern.permute.xlu0 0
      %477 = vperm.xlu0 %476, %v371
      %v478 = vpop.permute.xlu0 %477
      %481 = vset.pattern.permute.xlu0 0
      %482 = vperm.xlu0 %481, %v372
      %v483 = vpop.permute.xlu0 %482
      %486 = vset.pattern.permute.xlu0 0
      %487 = vperm.xlu0 %486, %v373
      %v488 = vpop.permute.xlu0 %487
      %491 = vset.pattern.permute.xlu0 0
      %492 = vperm.xlu0 %491, %v374
      %v493 = vpop.permute.xlu0 %492
      %496 = vset.pattern.permute.xlu0 0
      %497 = vperm.xlu0 %496, %v375
      %v498 = vpop.permute.xlu0 %497
      %501 = vset.pattern.permute.xlu0 0
      %502 = vperm.xlu0 %501, %v376
      %v503 = vpop.permute.xlu0 %502
      %506 = vset.pattern.permute.xlu0 0
      %507 = vperm.xlu0 %506, %v377
      %v508 = vpop.permute.xlu0 %507
      %511 = vset.pattern.permute.xlu0 0
      %512 = vperm.xlu0 %511, %v378
      %v513 = vpop.permute.xlu0 %512
      %516 = vset.pattern.permute.xlu0 0
      %517 = vperm.xlu0 %516, %v379
      %v518 = vpop.permute.xlu0 %517
      %521 = vset.pattern.permute.xlu0 0
      %522 = vperm.xlu0 %521, %v380
      %v523 = vpop.permute.xlu0 %522
      %526 = vset.pattern.permute.xlu0 0
      %527 = vperm.xlu0 %526, %v381
      %v528 = vpop.permute.xlu0 %527
      %531 = vset.pattern.permute.xlu0 0
      %532 = vperm.xlu0 %531, %v382
      %v533 = vpop.permute.xlu0 %532
      %536 = vset.pattern.permute.xlu0 0
      %537 = vperm.xlu0 %536, %v383
      %v538 = vpop.permute.xlu0 %537
      %541 = vset.pattern.permute.xlu0 0
      %542 = vperm.xlu0 %541, %v384
      %v543 = vpop.permute.xlu0 %542
      %546 = vset.pattern.permute.xlu0 0
      %547 = vperm.xlu0 %546, %v385
      %v548 = vpop.permute.xlu0 %547
      %551 = vset.pattern.permute.xlu0 0
      %552 = vperm.xlu0 %551, %v386
      %v553 = vpop.permute.xlu0 %552
      %556 = vset.pattern.permute.xlu0 0
      %557 = vperm.xlu0 %556, %v387
      %v558 = vpop.permute.xlu0 %557
      %561 = vset.pattern.permute.xlu0 0
      %562 = vperm.xlu0 %561, %v388
      %v563 = vpop.permute.xlu0 %562
      %566 = vset.pattern.permute.xlu0 0
      %567 = vperm.xlu0 %566, %v389
      %v568 = vpop.permute.xlu0 %567
      %571 = vset.pattern.permute.xlu0 0
      %572 = vperm.xlu0 %571, %v390
      %v573 = vpop.permute.xlu0 %572
      %576 = vset.pattern.permute.xlu0 0
      %577 = vperm.xlu0 %576, %v391
      %v578 = vpop.permute.xlu0 %577
      %581 = vset.pattern.permute.xlu0 0
      %582 = vperm.xlu0 %581, %v392
      %v583 = vpop.permute.xlu0 %582
      %586 = vset.pattern.permute.xlu0 0
      %587 = vperm.xlu0 %586, %v393
      %v588 = vpop.permute.xlu0 %587
      %591 = vset.pattern.permute.xlu0 0
      %592 = vperm.xlu0 %591, %v394
      %v593 = vpop.permute.xlu0 %592
      %596 = vset.pattern.permute.xlu0 0
      %597 = vperm.xlu0 %596, %v395
      %v598 = vpop.permute.xlu0 %597
      %601 = vset.pattern.permute.xlu0 0
      %602 = vperm.xlu0 %601, %v396
      %v603 = vpop.permute.xlu0 %602
      %606 = vset.pattern.permute.xlu0 0
      %607 = vperm.xlu0 %606, %v397
      %v608 = vpop.permute.xlu0 %607
      %611 = vset.pattern.permute.xlu0 0
      %612 = vperm.xlu0 %611, %v398
      %v613 = vpop.permute.xlu0 %612
      %616 = vset.pattern.permute.xlu0 0
      %617 = vperm.xlu0 %616, %v399
      %v618 = vpop.permute.xlu0 %617
      %621 = vset.pattern.permute.xlu0 0
      %622 = vperm.xlu0 %621, %v400
      %v623 = vpop.permute.xlu0 %622
      %626 = vset.pattern.permute.xlu0 0
      %627 = vperm.xlu0 %626, %v401
      %v628 = vpop.permute.xlu0 %627
      %631 = vset.pattern.permute.xlu0 0
      %632 = vperm.xlu0 %631, %v402
      %v633 = vpop.permute.xlu0 %632
      %636 = vset.pattern.permute.xlu0 0
      %637 = vperm.xlu0 %636, %v403
      %v638 = vpop.permute.xlu0 %637
      %641 = vset.pattern.permute.xlu0 0
      %642 = vperm.xlu0 %641, %v404
      %v643 = vpop.permute.xlu0 %642
      %646 = vset.pattern.permute.xlu0 0
      %647 = vperm.xlu0 %646, %v405
      %v648 = vpop.permute.xlu0 %647
      %651 = vset.pattern.permute.xlu0 0
      %652 = vperm.xlu0 %651, %v406
      %v653 = vpop.permute.xlu0 %652
      %656 = vset.pattern.permute.xlu0 0
      %657 = vperm.xlu0 %656, %v407
      %v658 = vpop.permute.xlu0 %657
      %661 = vset.pattern.permute.xlu0 0
      %662 = vperm.xlu0 %661, %v408
      %v663 = vpop.permute.xlu0 %662
      %666 = vset.pattern.permute.xlu0 0
      %667 = vperm.xlu0 %666, %v409
      %v668 = vpop.permute.xlu0 %667
      %671 = vset.pattern.permute.xlu0 0
      %672 = vperm.xlu0 %671, %v410
      %v673 = vpop.permute.xlu0 %672
      %676 = vset.pattern.permute.xlu0 0
      %677 = vperm.xlu0 %676, %v411
      %v678 = vpop.permute.xlu0 %677
      %681 = vset.pattern.permute.xlu0 0
      %682 = vperm.xlu0 %681, %v412
      %v683 = vpop.permute.xlu0 %682
      %686 = vset.pattern.permute.xlu0 0
      %687 = vperm.xlu0 %686, %v413
      %v688 = vpop.permute.xlu0 %687
      %691 = vset.pattern.permute.xlu0 0
      %692 = vperm.xlu0 %691, %v414
      %v693 = vpop.permute.xlu0 %692
      %696 = vset.pattern.permute.xlu0 0
      %697 = vperm.xlu0 %696, %v415
      %v698 = vpop.permute.xlu0 %697
      %701 = vset.pattern.permute.xlu0 0
      %702 = vperm.xlu0 %701, %v416
      %v703 = vpop.permute.xlu0 %702
      %706 = vset.pattern.permute.xlu0 0
      %707 = vperm.xlu0 %706, %v417
      %v708 = vpop.permute.xlu0 %707
      %711 = vset.pattern.permute.xlu0 0
      %712 = vperm.xlu0 %711, %v418
      %v713 = vpop.permute.xlu0 %712
      %716 = vset.pattern.permute.xlu0 0
      %717 = vperm.xlu0 %716, %v419
      %v718 = vpop.permute.xlu0 %717
      %721 = vset.pattern.permute.xlu0 0
      %722 = vperm.xlu0 %721, %v420
      %v723 = vpop.permute.xlu0 %722
      %726 = vset.pattern.permute.xlu0 0
      %727 = vperm.xlu0 %726, %v421
      %v728 = vpop.permute.xlu0 %727
      %731 = vset.pattern.permute.xlu0 0
      %732 = vperm.xlu0 %731, %v422
      %v733 = vpop.permute.xlu0 %732
      %736 = vset.pattern.permute.xlu0 0
      %737 = vperm.xlu0 %736, %v423
      %v738 = vpop.permute.xlu0 %737
      %741 = vset.pattern.permute.xlu0 0
      %742 = vperm.xlu0 %741, %v424
      %v743 = vpop.permute.xlu0 %742
      %vm745 = vcmask 523264
      %v747 = vsel %vm745, %v297, 0
      %v750 = vsel %vm745, %v298, 0
      %v753 = vsel %vm745, %v299, 0
      %v756 = vsel %vm745, %v300, 0
      %v759 = vsel %vm745, %v301, 0
      %v762 = vsel %vm745, %v302, 0
      %v765 = vsel %vm745, %v303, 0
      %v768 = vsel %vm745, %v304, 0
      %v771 = vsel %vm745, %v305, 0
      %v774 = vsel %vm745, %v306, 0
      %v777 = vsel %vm745, %v307, 0
      %v780 = vsel %vm745, %v308, 0
      %v783 = vsel %vm745, %v309, 0
      %v786 = vsel %vm745, %v310, 0
      %v789 = vsel %vm745, %v311, 0
      %v792 = vsel %vm745, %v312, 0
      %v795 = vsel %vm745, %v313, 0
      %v798 = vsel %vm745, %v314, 0
      %v801 = vsel %vm745, %v315, 0
      %v804 = vsel %vm745, %v316, 0
      %v807 = vsel %vm745, %v317, 0
      %v810 = vsel %vm745, %v318, 0
      %v813 = vsel %vm745, %v319, 0
      %v816 = vsel %vm745, %v320, 0
      %v819 = vsel %vm745, %v321, 0
      %v822 = vsel %vm745, %v322, 0
      %v825 = vsel %vm745, %v323, 0
      %v828 = vsel %vm745, %v324, 0
      %v831 = vsel %vm745, %v325, 0
      %v834 = vsel %vm745, %v326, 0
      %v837 = vsel %vm745, %v327, 0
      %v840 = vsel %vm745, %v328, 0
      %v843 = vsel %vm745, %v329, 0
      %v846 = vsel %vm745, %v330, 0
      %v849 = vsel %vm745, %v331, 0
      %v852 = vsel %vm745, %v332, 0
      %v855 = vsel %vm745, %v333, 0
      %v858 = vsel %vm745, %v334, 0
      %v861 = vsel %vm745, %v335, 0
      %v864 = vsel %vm745, %v336, 0
      %v867 = vsel %vm745, %v337, 0
      %v870 = vsel %vm745, %v338, 0
      %v873 = vsel %vm745, %v339, 0
      %v876 = vsel %vm745, %v340, 0
      %v879 = vsel %vm745, %v341, 0
      %v882 = vsel %vm745, %v342, 0
      %v885 = vsel %vm745, %v343, 0
      %v888 = vsel %vm745, %v344, 0
      %v891 = vsel %vm745, %v345, 0
      %v894 = vsel %vm745, %v346, 0
      %v897 = vsel %vm745, %v347, 0
      %v900 = vsel %vm745, %v348, 0
      %v903 = vsel %vm745, %v349, 0
      %v906 = vsel %vm745, %v350, 0
      %v909 = vsel %vm745, %v351, 0
      %v912 = vsel %vm745, %v352, 0
      %v915 = vsel %vm745, %v353, 0
      %v918 = vsel %vm745, %v354, 0
      %v921 = vsel %vm745, %v355, 0
      %v924 = vsel %vm745, %v356, 0
      %v927 = vsel %vm745, %v357, 0
      %v930 = vsel %vm745, %v358, 0
      %v933 = vsel %vm745, %v359, 0
      %v936 = vsel %vm745, %v360, 0
      %938 = vmatpush.msra.mxu0 0.0
      %939 = vmatpush.msra.mxu0 0.0
      %940 = vmatpush.msra.mxu0 0.0
      %941 = vmatpush.msra.mxu0 0.0
      %942 = vmatpush.msra.mxu0 0.0
      %943 = vmatpush.msra.mxu0 0.0
      %944 = vmatpush.msra.mxu0 0.0
      %945 = vmatpush.msra.mxu0 0.0
      %946 = vmatpush.msra.mxu0 %v295
      %947 = vmatpush.msra.mxu0 %v293
      %948 = vmatpush.msra.mxu0 %v291
      %949 = vmatpush.msra.mxu0 %v289
      %950 = vmatpush.msra.mxu0 %v287
      %951 = vmatpush.msra.mxu0 %v285
      %952 = vmatpush.msra.mxu0 %v283
      %953 = vmatpush.msra.mxu0 %v281
      %954 = vmatmul.f32.gmra.mxu0 %v747
      %v955 = vpop.f32.mrf.mxu0
      %v956 = vadd.f32 %v428, %v955
      %957 = vmatmul.f32.gmra.mxu0 %v750
      %v958 = vpop.f32.mrf.mxu0
      %v959 = vadd.f32 %v433, %v958
      %960 = vmatmul.f32.gmra.mxu0 %v753
      %v961 = vpop.f32.mrf.mxu0
      %v962 = vadd.f32 %v438, %v961
      %963 = vmatmul.f32.gmra.mxu0 %v756
      %v964 = vpop.f32.mrf.mxu0
      %v965 = vadd.f32 %v443, %v964
      %966 = vmatmul.f32.gmra.mxu0 %v759
      %v967 = vpop.f32.mrf.mxu0
      %v968 = vadd.f32 %v448, %v967
      %969 = vmatmul.f32.gmra.mxu0 %v762
      %v970 = vpop.f32.mrf.mxu0
      %v971 = vadd.f32 %v453, %v970
      %972 = vmatmul.f32.gmra.mxu0 %v765
      %v973 = vpop.f32.mrf.mxu0
      %v974 = vadd.f32 %v458, %v973
      %975 = vmatmul.f32.gmra.mxu0 %v768
      %v976 = vpop.f32.mrf.mxu0
      %v977 = vadd.f32 %v463, %v976
      %978 = vmatmul.f32.gmra.mxu0 %v771
      %v979 = vpop.f32.mrf.mxu0
      %v980 = vadd.f32 %v468, %v979
      %981 = vmatmul.f32.gmra.mxu0 %v774
      %v982 = vpop.f32.mrf.mxu0
      %v983 = vadd.f32 %v473, %v982
      %984 = vmatmul.f32.gmra.mxu0 %v777
      %v985 = vpop.f32.mrf.mxu0
      %v986 = vadd.f32 %v478, %v985
      %987 = vmatmul.f32.gmra.mxu0 %v780
      %v988 = vpop.f32.mrf.mxu0
      %v989 = vadd.f32 %v483, %v988
      %990 = vmatmul.f32.gmra.mxu0 %v783
      %v991 = vpop.f32.mrf.mxu0
      %v992 = vadd.f32 %v488, %v991
      %993 = vmatmul.f32.gmra.mxu0 %v786
      %v994 = vpop.f32.mrf.mxu0
      %v995 = vadd.f32 %v493, %v994
      %996 = vmatmul.f32.gmra.mxu0 %v789
      %v997 = vpop.f32.mrf.mxu0
      %v998 = vadd.f32 %v498, %v997
      %999 = vmatmul.f32.gmra.mxu0 %v792
      %v1000 = vpop.f32.mrf.mxu0
      %v1001 = vadd.f32 %v503, %v1000
      %1002 = vmatmul.f32.gmra.mxu0 %v795
      %v1003 = vpop.f32.mrf.mxu0
      %v1004 = vadd.f32 %v508, %v1003
      %1005 = vmatmul.f32.gmra.mxu0 %v798
      %v1006 = vpop.f32.mrf.mxu0
      %v1007 = vadd.f32 %v513, %v1006
      %1008 = vmatmul.f32.gmra.mxu0 %v801
      %v1009 = vpop.f32.mrf.mxu0
      %v1010 = vadd.f32 %v518, %v1009
      %1011 = vmatmul.f32.gmra.mxu0 %v804
      %v1012 = vpop.f32.mrf.mxu0
      %v1013 = vadd.f32 %v523, %v1012
      %1014 = vmatmul.f32.gmra.mxu0 %v807
      %v1015 = vpop.f32.mrf.mxu0
      %v1016 = vadd.f32 %v528, %v1015
      %1017 = vmatmul.f32.gmra.mxu0 %v810
      %v1018 = vpop.f32.mrf.mxu0
      %v1019 = vadd.f32 %v533, %v1018
      %1020 = vmatmul.f32.gmra.mxu0 %v813
      %v1021 = vpop.f32.mrf.mxu0
      %v1022 = vadd.f32 %v538, %v1021
      %1023 = vmatmul.f32.gmra.mxu0 %v816
      %v1024 = vpop.f32.mrf.mxu0
      %v1025 = vadd.f32 %v543, %v1024
      %1026 = vmatmul.f32.gmra.mxu0 %v819
      %v1027 = vpop.f32.mrf.mxu0
      %v1028 = vadd.f32 %v548, %v1027
      %1029 = vmatmul.f32.gmra.mxu0 %v822
      %v1030 = vpop.f32.mrf.mxu0
      %v1031 = vadd.f32 %v553, %v1030
      %1032 = vmatmul.f32.gmra.mxu0 %v825
      %v1033 = vpop.f32.mrf.mxu0
      %v1034 = vadd.f32 %v558, %v1033
      %1035 = vmatmul.f32.gmra.mxu0 %v828
      %v1036 = vpop.f32.mrf.mxu0
      %v1037 = vadd.f32 %v563, %v1036
      %1038 = vmatmul.f32.gmra.mxu0 %v831
      %v1039 = vpop.f32.mrf.mxu0
      %v1040 = vadd.f32 %v568, %v1039
      %1041 = vmatmul.f32.gmra.mxu0 %v834
      %v1042 = vpop.f32.mrf.mxu0
      %v1043 = vadd.f32 %v573, %v1042
      %1044 = vmatmul.f32.gmra.mxu0 %v837
      %v1045 = vpop.f32.mrf.mxu0
      %v1046 = vadd.f32 %v578, %v1045
      %1047 = vmatmul.f32.gmra.mxu0 %v840
      %v1048 = vpop.f32.mrf.mxu0
      %v1049 = vadd.f32 %v583, %v1048
      %1050 = vmatmul.f32.gmra.mxu0 %v843
      %v1051 = vpop.f32.mrf.mxu0
      %v1052 = vadd.f32 %v588, %v1051
      %1053 = vmatmul.f32.gmra.mxu0 %v846
      %v1054 = vpop.f32.mrf.mxu0
      %v1055 = vadd.f32 %v593, %v1054
      %1056 = vmatmul.f32.gmra.mxu0 %v849
      %v1057 = vpop.f32.mrf.mxu0
      %v1058 = vadd.f32 %v598, %v1057
      %1059 = vmatmul.f32.gmra.mxu0 %v852
      %v1060 = vpop.f32.mrf.mxu0
      %v1061 = vadd.f32 %v603, %v1060
      %1062 = vmatmul.f32.gmra.mxu0 %v855
      %v1063 = vpop.f32.mrf.mxu0
      %v1064 = vadd.f32 %v608, %v1063
      %1065 = vmatmul.f32.gmra.mxu0 %v858
      %v1066 = vpop.f32.mrf.mxu0
      %v1067 = vadd.f32 %v613, %v1066
      %1068 = vmatmul.f32.gmra.mxu0 %v861
      %v1069 = vpop.f32.mrf.mxu0
      %v1070 = vadd.f32 %v618, %v1069
      %1071 = vmatmul.f32.gmra.mxu0 %v864
      %v1072 = vpop.f32.mrf.mxu0
      %v1073 = vadd.f32 %v623, %v1072
      %1074 = vmatmul.f32.gmra.mxu0 %v867
      %v1075 = vpop.f32.mrf.mxu0
      %v1076 = vadd.f32 %v628, %v1075
      %1077 = vmatmul.f32.gmra.mxu0 %v870
      %v1078 = vpop.f32.mrf.mxu0
      %v1079 = vadd.f32 %v633, %v1078
      %1080 = vmatmul.f32.gmra.mxu0 %v873
      %v1081 = vpop.f32.mrf.mxu0
      %v1082 = vadd.f32 %v638, %v1081
      %1083 = vmatmul.f32.gmra.mxu0 %v876
      %v1084 = vpop.f32.mrf.mxu0
      %v1085 = vadd.f32 %v643, %v1084
      %1086 = vmatmul.f32.gmra.mxu0 %v879
      %v1087 = vpop.f32.mrf.mxu0
      %v1088 = vadd.f32 %v648, %v1087
      %1089 = vmatmul.f32.gmra.mxu0 %v882
      %v1090 = vpop.f32.mrf.mxu0
      %v1091 = vadd.f32 %v653, %v1090
      %1092 = vmatmul.f32.gmra.mxu0 %v885
      %v1093 = vpop.f32.mrf.mxu0
      %v1094 = vadd.f32 %v658, %v1093
      %1095 = vmatmul.f32.gmra.mxu0 %v888
      %v1096 = vpop.f32.mrf.mxu0
      %v1097 = vadd.f32 %v663, %v1096
      %1098 = vmatmul.f32.gmra.mxu0 %v891
      %v1099 = vpop.f32.mrf.mxu0
      %v1100 = vadd.f32 %v668, %v1099
      %1101 = vmatmul.f32.gmra.mxu0 %v894
      %v1102 = vpop.f32.mrf.mxu0
      %v1103 = vadd.f32 %v673, %v1102
      %1104 = vmatmul.f32.gmra.mxu0 %v897
      %v1105 = vpop.f32.mrf.mxu0
      %v1106 = vadd.f32 %v678, %v1105
      %1107 = vmatmul.f32.gmra.mxu0 %v900
      %v1108 = vpop.f32.mrf.mxu0
      %v1109 = vadd.f32 %v683, %v1108
      %1110 = vmatmul.f32.gmra.mxu0 %v903
      %v1111 = vpop.f32.mrf.mxu0
      %v1112 = vadd.f32 %v688, %v1111
      %1113 = vmatmul.f32.gmra.mxu0 %v906
      %v1114 = vpop.f32.mrf.mxu0
      %v1115 = vadd.f32 %v693, %v1114
      %1116 = vmatmul.f32.gmra.mxu0 %v909
      %v1117 = vpop.f32.mrf.mxu0
      %v1118 = vadd.f32 %v698, %v1117
      %1119 = vmatmul.f32.gmra.mxu0 %v912
      %v1120 = vpop.f32.mrf.mxu0
      %v1121 = vadd.f32 %v703, %v1120
      %1122 = vmatmul.f32.gmra.mxu0 %v915
      %v1123 = vpop.f32.mrf.mxu0
      %v1124 = vadd.f32 %v708, %v1123
      %1125 = vmatmul.f32.gmra.mxu0 %v918
      %v1126 = vpop.f32.mrf.mxu0
      %v1127 = vadd.f32 %v713, %v1126
      %1128 = vmatmul.f32.gmra.mxu0 %v921
      %v1129 = vpop.f32.mrf.mxu0
      %v1130 = vadd.f32 %v718, %v1129
      %1131 = vmatmul.f32.gmra.mxu0 %v924
      %v1132 = vpop.f32.mrf.mxu0
      %v1133 = vadd.f32 %v723, %v1132
      %1134 = vmatmul.f32.gmra.mxu0 %v927
      %v1135 = vpop.f32.mrf.mxu0
      %v1136 = vadd.f32 %v728, %v1135
      %1137 = vmatmul.f32.gmra.mxu0 %v930
      %v1138 = vpop.f32.mrf.mxu0
      %v1139 = vadd.f32 %v733, %v1138
      %1140 = vmatmul.f32.gmra.mxu0 %v933
      %v1141 = vpop.f32.mrf.mxu0
      %v1142 = vadd.f32 %v738, %v1141
      %1143 = vmatmul.f32.gmra.mxu0 %v936
      %v1144 = vpop.f32.mrf.mxu0
      %v1145 = vadd.f32 %v743, %v1144
      %1146 = vdwg.mxu0
      %1147 = vmatpush.msra.mxu0 0.0
      %1148 = vmatpush.msra.mxu0 0.0
      %1149 = vmatpush.msra.mxu0 0.0
      %1150 = vmatpush.msra.mxu0 0.0
      %1151 = vmatpush.msra.mxu0 0.0
      %1152 = vmatpush.msra.mxu0 0.0
      %1153 = vmatpush.msra.mxu0 0.0
      %1154 = vmatpush.msra.mxu0 0.0
      %1155 = vmatpush.msra.mxu0 %v296
      %1156 = vmatpush.msra.mxu0 %v294
      %1157 = vmatpush.msra.mxu0 %v292
      %1158 = vmatpush.msra.mxu0 %v290
      %1159 = vmatpush.msra.mxu0 %v288
      %1160 = vmatpush.msra.mxu0 %v286
      %1161 = vmatpush.msra.mxu0 %v284
      %1162 = vmatpush.msra.mxu0 %v282
      %1163 = vmatmul.f32.gmra.mxu0 %v747
      %v1164 = vpop.f32.mrf.mxu0
      %v1165 = vadd.f32 %v428, %v1164
      %1166 = vmatmul.f32.gmra.mxu0 %v750
      %v1167 = vpop.f32.mrf.mxu0
      %v1168 = vadd.f32 %v433, %v1167
      %1169 = vmatmul.f32.gmra.mxu0 %v753
      %v1170 = vpop.f32.mrf.mxu0
      %v1171 = vadd.f32 %v438, %v1170
      %1172 = vmatmul.f32.gmra.mxu0 %v756
      %v1173 = vpop.f32.mrf.mxu0
      %v1174 = vadd.f32 %v443, %v1173
      %1175 = vmatmul.f32.gmra.mxu0 %v759
      %v1176 = vpop.f32.mrf.mxu0
      %v1177 = vadd.f32 %v448, %v1176
      %1178 = vmatmul.f32.gmra.mxu0 %v762
      %v1179 = vpop.f32.mrf.mxu0
      %v1180 = vadd.f32 %v453, %v1179
      %1181 = vmatmul.f32.gmra.mxu0 %v765
      %v1182 = vpop.f32.mrf.mxu0
      %v1183 = vadd.f32 %v458, %v1182
      %1184 = vmatmul.f32.gmra.mxu0 %v768
      %v1185 = vpop.f32.mrf.mxu0
      %v1186 = vadd.f32 %v463, %v1185
      %1187 = vmatmul.f32.gmra.mxu0 %v771
      %v1188 = vpop.f32.mrf.mxu0
      %v1189 = vadd.f32 %v468, %v1188
      %1190 = vmatmul.f32.gmra.mxu0 %v774
      %v1191 = vpop.f32.mrf.mxu0
      %v1192 = vadd.f32 %v473, %v1191
      %1193 = vmatmul.f32.gmra.mxu0 %v777
      %v1194 = vpop.f32.mrf.mxu0
      %v1195 = vadd.f32 %v478, %v1194
      %1196 = vmatmul.f32.gmra.mxu0 %v780
      %v1197 = vpop.f32.mrf.mxu0
      %v1198 = vadd.f32 %v483, %v1197
      %1199 = vmatmul.f32.gmra.mxu0 %v783
      %v1200 = vpop.f32.mrf.mxu0
      %v1201 = vadd.f32 %v488, %v1200
      %1202 = vmatmul.f32.gmra.mxu0 %v786
      %v1203 = vpop.f32.mrf.mxu0
      %v1204 = vadd.f32 %v493, %v1203
      %1205 = vmatmul.f32.gmra.mxu0 %v789
      %v1206 = vpop.f32.mrf.mxu0
      %v1207 = vadd.f32 %v498, %v1206
      %1208 = vmatmul.f32.gmra.mxu0 %v792
      %v1209 = vpop.f32.mrf.mxu0
      %v1210 = vadd.f32 %v503, %v1209
      %1211 = vmatmul.f32.gmra.mxu0 %v795
      %v1212 = vpop.f32.mrf.mxu0
      %v1213 = vadd.f32 %v508, %v1212
      %1214 = vmatmul.f32.gmra.mxu0 %v798
      %v1215 = vpop.f32.mrf.mxu0
      %v1216 = vadd.f32 %v513, %v1215
      %1217 = vmatmul.f32.gmra.mxu0 %v801
      %v1218 = vpop.f32.mrf.mxu0
      %v1219 = vadd.f32 %v518, %v1218
      %1220 = vmatmul.f32.gmra.mxu0 %v804
      %v1221 = vpop.f32.mrf.mxu0
      %v1222 = vadd.f32 %v523, %v1221
      %1223 = vmatmul.f32.gmra.mxu0 %v807
      %v1224 = vpop.f32.mrf.mxu0
      %v1225 = vadd.f32 %v528, %v1224
      %1226 = vmatmul.f32.gmra.mxu0 %v810
      %v1227 = vpop.f32.mrf.mxu0
      %v1228 = vadd.f32 %v533, %v1227
      %1229 = vmatmul.f32.gmra.mxu0 %v813
      %v1230 = vpop.f32.mrf.mxu0
      %v1231 = vadd.f32 %v538, %v1230
      %1232 = vmatmul.f32.gmra.mxu0 %v816
      %v1233 = vpop.f32.mrf.mxu0
      %v1234 = vadd.f32 %v543, %v1233
      %1235 = vmatmul.f32.gmra.mxu0 %v819
      %v1236 = vpop.f32.mrf.mxu0
      %v1237 = vadd.f32 %v548, %v1236
      %1238 = vmatmul.f32.gmra.mxu0 %v822
      %v1239 = vpop.f32.mrf.mxu0
      %v1240 = vadd.f32 %v553, %v1239
      %1241 = vmatmul.f32.gmra.mxu0 %v825
      %v1242 = vpop.f32.mrf.mxu0
      %v1243 = vadd.f32 %v558, %v1242
      %1244 = vmatmul.f32.gmra.mxu0 %v828
      %v1245 = vpop.f32.mrf.mxu0
      %v1246 = vadd.f32 %v563, %v1245
      %1247 = vmatmul.f32.gmra.mxu0 %v831
      %v1248 = vpop.f32.mrf.mxu0
      %v1249 = vadd.f32 %v568, %v1248
      %1250 = vmatmul.f32.gmra.mxu0 %v834
      %v1251 = vpop.f32.mrf.mxu0
      %v1252 = vadd.f32 %v573, %v1251
      %1253 = vmatmul.f32.gmra.mxu0 %v837
      %v1254 = vpop.f32.mrf.mxu0
      %v1255 = vadd.f32 %v578, %v1254
      %1256 = vmatmul.f32.gmra.mxu0 %v840
      %v1257 = vpop.f32.mrf.mxu0
      %v1258 = vadd.f32 %v583, %v1257
      %1259 = vmatmul.f32.gmra.mxu0 %v843
      %v1260 = vpop.f32.mrf.mxu0
      %v1261 = vadd.f32 %v588, %v1260
      %1262 = vmatmul.f32.gmra.mxu0 %v846
      %v1263 = vpop.f32.mrf.mxu0
      %v1264 = vadd.f32 %v593, %v1263
      %1265 = vmatmul.f32.gmra.mxu0 %v849
      %v1266 = vpop.f32.mrf.mxu0
      %v1267 = vadd.f32 %v598, %v1266
      %1268 = vmatmul.f32.gmra.mxu0 %v852
      %v1269 = vpop.f32.mrf.mxu0
      %v1270 = vadd.f32 %v603, %v1269
      %1271 = vmatmul.f32.gmra.mxu0 %v855
      %v1272 = vpop.f32.mrf.mxu0
      %v1273 = vadd.f32 %v608, %v1272
      %1274 = vmatmul.f32.gmra.mxu0 %v858
      %v1275 = vpop.f32.mrf.mxu0
      %v1276 = vadd.f32 %v613, %v1275
      %1277 = vmatmul.f32.gmra.mxu0 %v861
      %v1278 = vpop.f32.mrf.mxu0
      %v1279 = vadd.f32 %v618, %v1278
      %1280 = vmatmul.f32.gmra.mxu0 %v864
      %v1281 = vpop.f32.mrf.mxu0
      %v1282 = vadd.f32 %v623, %v1281
      %1283 = vmatmul.f32.gmra.mxu0 %v867
      %v1284 = vpop.f32.mrf.mxu0
      %v1285 = vadd.f32 %v628, %v1284
      %1286 = vmatmul.f32.gmra.mxu0 %v870
      %v1287 = vpop.f32.mrf.mxu0
      %v1288 = vadd.f32 %v633, %v1287
      %1289 = vmatmul.f32.gmra.mxu0 %v873
      %v1290 = vpop.f32.mrf.mxu0
      %v1291 = vadd.f32 %v638, %v1290
      %1292 = vmatmul.f32.gmra.mxu0 %v876
      %v1293 = vpop.f32.mrf.mxu0
      %v1294 = vadd.f32 %v643, %v1293
      %1295 = vmatmul.f32.gmra.mxu0 %v879
      %v1296 = vpop.f32.mrf.mxu0
      %v1297 = vadd.f32 %v648, %v1296
      %1298 = vmatmul.f32.gmra.mxu0 %v882
      %v1299 = vpop.f32.mrf.mxu0
      %v1300 = vadd.f32 %v653, %v1299
      %1301 = vmatmul.f32.gmra.mxu0 %v885
      %v1302 = vpop.f32.mrf.mxu0
      %v1303 = vadd.f32 %v658, %v1302
      %1304 = vmatmul.f32.gmra.mxu0 %v888
      %v1305 = vpop.f32.mrf.mxu0
      %v1306 = vadd.f32 %v663, %v1305
      %1307 = vmatmul.f32.gmra.mxu0 %v891
      %v1308 = vpop.f32.mrf.mxu0
      %v1309 = vadd.f32 %v668, %v1308
      %1310 = vmatmul.f32.gmra.mxu0 %v894
      %v1311 = vpop.f32.mrf.mxu0
      %v1312 = vadd.f32 %v673, %v1311
      %1313 = vmatmul.f32.gmra.mxu0 %v897
      %v1314 = vpop.f32.mrf.mxu0
      %v1315 = vadd.f32 %v678, %v1314
      %1316 = vmatmul.f32.gmra.mxu0 %v900
      %v1317 = vpop.f32.mrf.mxu0
      %v1318 = vadd.f32 %v683, %v1317
      %1319 = vmatmul.f32.gmra.mxu0 %v903
      %v1320 = vpop.f32.mrf.mxu0
      %v1321 = vadd.f32 %v688, %v1320
      %1322 = vmatmul.f32.gmra.mxu0 %v906
      %v1323 = vpop.f32.mrf.mxu0
      %v1324 = vadd.f32 %v693, %v1323
      %1325 = vmatmul.f32.gmra.mxu0 %v909
      %v1326 = vpop.f32.mrf.mxu0
      %v1327 = vadd.f32 %v698, %v1326
      %1328 = vmatmul.f32.gmra.mxu0 %v912
      %v1329 = vpop.f32.mrf.mxu0
      %v1330 = vadd.f32 %v703, %v1329
      %1331 = vmatmul.f32.gmra.mxu0 %v915
      %v1332 = vpop.f32.mrf.mxu0
      %v1333 = vadd.f32 %v708, %v1332
      %1334 = vmatmul.f32.gmra.mxu0 %v918
      %v1335 = vpop.f32.mrf.mxu0
      %v1336 = vadd.f32 %v713, %v1335
      %1337 = vmatmul.f32.gmra.mxu0 %v921
      %v1338 = vpop.f32.mrf.mxu0
      %v1339 = vadd.f32 %v718, %v1338
      %1340 = vmatmul.f32.gmra.mxu0 %v924
      %v1341 = vpop.f32.mrf.mxu0
      %v1342 = vadd.f32 %v723, %v1341
      %1343 = vmatmul.f32.gmra.mxu0 %v927
      %v1344 = vpop.f32.mrf.mxu0
      %v1345 = vadd.f32 %v728, %v1344
      %1346 = vmatmul.f32.gmra.mxu0 %v930
      %v1347 = vpop.f32.mrf.mxu0
      %v1348 = vadd.f32 %v733, %v1347
      %1349 = vmatmul.f32.gmra.mxu0 %v933
      %v1350 = vpop.f32.mrf.mxu0
      %v1351 = vadd.f32 %v738, %v1350
      %1352 = vmatmul.f32.gmra.mxu0 %v936
      %v1353 = vpop.f32.mrf.mxu0
      %v1354 = vadd.f32 %v743, %v1353
      %1355 = vdwg.mxu0
      %v1356 = vlaneseq
      %v1357 = vshrl.u32 %v1356, 7
      %v1358 = vadd.s32 %v1357, 8
      %v1359 = vadd.s32 %v1357, 16
      %v1360 = vadd.s32 %v1357, 24
      %v1361 = vadd.s32 %v1357, 32
      %v1362 = vadd.s32 %v1357, 40
      %v1363 = vadd.s32 %v1357, 48
      %v1364 = vadd.s32 %v1357, 56
      %v1365 = vadd.s32 %v1357, 64
      %v1366 = vadd.s32 %v1357, 72
      %v1367 = vadd.s32 %v1357, 80
      %v1368 = vadd.s32 %v1357, 88
      %v1369 = vadd.s32 %v1357, 96
      %v1370 = vadd.s32 %v1357, 104
      %v1371 = vadd.s32 %v1357, 112
      %v1372 = vadd.s32 %v1357, 120
      %v1373 = vadd.s32 %v1357, 128
      %v1374 = vadd.s32 %v1357, 136
      %v1375 = vadd.s32 %v1357, 144
      %v1376 = vadd.s32 %v1357, 152
      %v1377 = vadd.s32 %v1357, 160
      %v1378 = vadd.s32 %v1357, 168
      %v1379 = vadd.s32 %v1357, 176
      %v1380 = vadd.s32 %v1357, 184
      %v1381 = vadd.s32 %v1357, 192
      %v1382 = vadd.s32 %v1357, 200
      %v1383 = vadd.s32 %v1357, 208
      %v1384 = vadd.s32 %v1357, 216
      %v1385 = vadd.s32 %v1357, 224
      %v1386 = vadd.s32 %v1357, 232
      %v1387 = vadd.s32 %v1357, 240
      %v1388 = vadd.s32 %v1357, 248
      %v1389 = vadd.s32 %v1357, 256
      %v1390 = vadd.s32 %v1357, 264
      %v1391 = vadd.s32 %v1357, 272
      %v1392 = vadd.s32 %v1357, 280
      %v1393 = vadd.s32 %v1357, 288
      %v1394 = vadd.s32 %v1357, 296
      %v1395 = vadd.s32 %v1357, 304
      %v1396 = vadd.s32 %v1357, 312
      %v1397 = vadd.s32 %v1357, 320
      %v1398 = vadd.s32 %v1357, 328
      %v1399 = vadd.s32 %v1357, 336
      %v1400 = vadd.s32 %v1357, 344
      %v1401 = vadd.s32 %v1357, 352
      %v1402 = vadd.s32 %v1357, 360
      %v1403 = vadd.s32 %v1357, 368
      %v1404 = vadd.s32 %v1357, 376
      %v1405 = vadd.s32 %v1357, 384
      %v1406 = vadd.s32 %v1357, 392
      %v1407 = vadd.s32 %v1357, 400
      %v1408 = vadd.s32 %v1357, 408
      %v1409 = vadd.s32 %v1357, 416
      %v1410 = vadd.s32 %v1357, 424
      %v1411 = vadd.s32 %v1357, 432
      %v1412 = vadd.s32 %v1357, 440
      %v1413 = vadd.s32 %v1357, 448
      %v1414 = vadd.s32 %v1357, 456
      %v1415 = vadd.s32 %v1357, 464
      %v1416 = vadd.s32 %v1357, 472
      %v1417 = vadd.s32 %v1357, 480
      %v1418 = vadd.s32 %v1357, 488
      %v1419 = vadd.s32 %v1357, 496
      %v1420 = vadd.s32 %v1357, 504
      %v1421 = vmin.f32 %v956, %v962
      %v1422 = vmin.f32 %v959, %v965
      %v1423 = vmin.f32 %v1421, %v968
      %v1424 = vmin.f32 %v1422, %v971
      %v1425 = vmin.f32 %v1423, %v974
      %v1426 = vmin.f32 %v1424, %v977
      %v1427 = vmin.f32 %v1425, %v980
      %v1428 = vmin.f32 %v1426, %v983
      %v1429 = vmin.f32 %v1427, %v986
      %v1430 = vmin.f32 %v1428, %v989
      %v1431 = vmin.f32 %v1429, %v992
      %v1432 = vmin.f32 %v1430, %v995
      %v1433 = vmin.f32 %v1431, %v998
      %v1434 = vmin.f32 %v1432, %v1001
      %v1435 = vmin.f32 %v1433, %v1004
      %v1436 = vmin.f32 %v1434, %v1007
      %v1437 = vmin.f32 %v1435, %v1010
      %v1438 = vmin.f32 %v1436, %v1013
      %v1439 = vmin.f32 %v1437, %v1016
      %v1440 = vmin.f32 %v1438, %v1019
      %v1441 = vmin.f32 %v1439, %v1022
      %v1442 = vmin.f32 %v1440, %v1025
      %v1443 = vmin.f32 %v1441, %v1028
      %v1444 = vmin.f32 %v1442, %v1031
      %v1445 = vmin.f32 %v1443, %v1034
      %v1446 = vmin.f32 %v1444, %v1037
      %v1447 = vmin.f32 %v1445, %v1040
      %v1448 = vmin.f32 %v1446, %v1043
      %v1449 = vmin.f32 %v1447, %v1046
      %v1450 = vmin.f32 %v1448, %v1049
      %v1451 = vmin.f32 %v1449, %v1052
      %v1452 = vmin.f32 %v1450, %v1055
      %v1453 = vmin.f32 %v1451, %v1058
      %v1454 = vmin.f32 %v1452, %v1061
      %v1455 = vmin.f32 %v1453, %v1064
      %v1456 = vmin.f32 %v1454, %v1067
      %v1457 = vmin.f32 %v1455, %v1070
      %v1458 = vmin.f32 %v1456, %v1073
      %v1459 = vmin.f32 %v1457, %v1076
      %v1460 = vmin.f32 %v1458, %v1079
      %v1461 = vmin.f32 %v1459, %v1082
      %v1462 = vmin.f32 %v1460, %v1085
      %v1463 = vmin.f32 %v1461, %v1088
      %v1464 = vmin.f32 %v1462, %v1091
      %v1465 = vmin.f32 %v1463, %v1094
      %v1466 = vmin.f32 %v1464, %v1097
      %v1467 = vmin.f32 %v1465, %v1100
      %v1468 = vmin.f32 %v1466, %v1103
      %v1469 = vmin.f32 %v1467, %v1106
      %v1470 = vmin.f32 %v1468, %v1109
      %v1471 = vmin.f32 %v1469, %v1112
      %v1472 = vmin.f32 %v1470, %v1115
      %v1473 = vmin.f32 %v1471, %v1118
      %v1474 = vmin.f32 %v1472, %v1121
      %v1475 = vmin.f32 %v1473, %v1124
      %v1476 = vmin.f32 %v1474, %v1127
      %v1477 = vmin.f32 %v1475, %v1130
      %v1478 = vmin.f32 %v1476, %v1133
      %v1479 = vmin.f32 %v1477, %v1136
      %v1480 = vmin.f32 %v1478, %v1139
      %v1481 = vmin.f32 %v1479, %v1142
      %v1482 = vmin.f32 %v1480, %v1145
      %v1483 = vmin.f32 %v1481, %v1482
      %v1484 = vrot.slane %v1483, 4
      %v1485 = vmin.f32 %v1483, %v1484
      %v1486 = vrot.slane %v1485, 2
      %v1487 = vmin.f32 %v1485, %v1486
      %v1488 = vrot.slane %v1487, 1
      %v1489 = vmin.f32 %v1487, %v1488
      %v1490 = vmin.f32 %v1165, %v1171
      %v1491 = vmin.f32 %v1168, %v1174
      %v1492 = vmin.f32 %v1490, %v1177
      %v1493 = vmin.f32 %v1491, %v1180
      %v1494 = vmin.f32 %v1492, %v1183
      %v1495 = vmin.f32 %v1493, %v1186
      %v1496 = vmin.f32 %v1494, %v1189
      %v1497 = vmin.f32 %v1495, %v1192
      %v1498 = vmin.f32 %v1496, %v1195
      %v1499 = vmin.f32 %v1497, %v1198
      %v1500 = vmin.f32 %v1498, %v1201
      %v1501 = vmin.f32 %v1499, %v1204
      %v1502 = vmin.f32 %v1500, %v1207
      %v1503 = vmin.f32 %v1501, %v1210
      %v1504 = vmin.f32 %v1502, %v1213
      %v1505 = vmin.f32 %v1503, %v1216
      %v1506 = vmin.f32 %v1504, %v1219
      %v1507 = vmin.f32 %v1505, %v1222
      %v1508 = vmin.f32 %v1506, %v1225
      %v1509 = vmin.f32 %v1507, %v1228
      %v1510 = vmin.f32 %v1508, %v1231
      %v1511 = vmin.f32 %v1509, %v1234
      %v1512 = vmin.f32 %v1510, %v1237
      %v1513 = vmin.f32 %v1511, %v1240
      %v1514 = vmin.f32 %v1512, %v1243
      %v1515 = vmin.f32 %v1513, %v1246
      %v1516 = vmin.f32 %v1514, %v1249
      %v1517 = vmin.f32 %v1515, %v1252
      %v1518 = vmin.f32 %v1516, %v1255
      %v1519 = vmin.f32 %v1517, %v1258
      %v1520 = vmin.f32 %v1518, %v1261
      %v1521 = vmin.f32 %v1519, %v1264
      %v1522 = vmin.f32 %v1520, %v1267
      %v1523 = vmin.f32 %v1521, %v1270
      %v1524 = vmin.f32 %v1522, %v1273
      %v1525 = vmin.f32 %v1523, %v1276
      %v1526 = vmin.f32 %v1524, %v1279
      %v1527 = vmin.f32 %v1525, %v1282
      %v1528 = vmin.f32 %v1526, %v1285
      %v1529 = vmin.f32 %v1527, %v1288
      %v1530 = vmin.f32 %v1528, %v1291
      %v1531 = vmin.f32 %v1529, %v1294
      %v1532 = vmin.f32 %v1530, %v1297
      %v1533 = vmin.f32 %v1531, %v1300
      %v1534 = vmin.f32 %v1532, %v1303
      %v1535 = vmin.f32 %v1533, %v1306
      %v1536 = vmin.f32 %v1534, %v1309
      %v1537 = vmin.f32 %v1535, %v1312
      %v1538 = vmin.f32 %v1536, %v1315
      %v1539 = vmin.f32 %v1537, %v1318
      %v1540 = vmin.f32 %v1538, %v1321
      %v1541 = vmin.f32 %v1539, %v1324
      %v1542 = vmin.f32 %v1540, %v1327
      %v1543 = vmin.f32 %v1541, %v1330
      %v1544 = vmin.f32 %v1542, %v1333
      %v1545 = vmin.f32 %v1543, %v1336
      %v1546 = vmin.f32 %v1544, %v1339
      %v1547 = vmin.f32 %v1545, %v1342
      %v1548 = vmin.f32 %v1546, %v1345
      %v1549 = vmin.f32 %v1547, %v1348
      %v1550 = vmin.f32 %v1548, %v1351
      %v1551 = vmin.f32 %v1549, %v1354
      %v1552 = vmin.f32 %v1550, %v1551
      %v1553 = vrot.slane %v1552, 4
      %v1554 = vmin.f32 %v1552, %v1553
      %v1555 = vrot.slane %v1554, 2
      %v1556 = vmin.f32 %v1554, %v1555
      %v1557 = vrot.slane %v1556, 1
      %v1558 = vmin.f32 %v1556, %v1557
      %vm1559 = vcmp.le.f32.partialorder %v956, %v1489
      %vm1560 = vcmp.le.f32.partialorder %v1165, %v1558
      %vm1561 = vcmp.le.f32.partialorder %v959, %v1489
      %vm1562 = vcmp.le.f32.partialorder %v1168, %v1558
      %vm1563 = vcmp.le.f32.partialorder %v962, %v1489
      %vm1564 = vcmp.le.f32.partialorder %v1171, %v1558
      %vm1565 = vcmp.le.f32.partialorder %v965, %v1489
      %vm1566 = vcmp.le.f32.partialorder %v1174, %v1558
      %vm1567 = vcmp.le.f32.partialorder %v968, %v1489
      %vm1568 = vcmp.le.f32.partialorder %v1177, %v1558
      %vm1569 = vcmp.le.f32.partialorder %v971, %v1489
      %vm1570 = vcmp.le.f32.partialorder %v1180, %v1558
      %vm1571 = vcmp.le.f32.partialorder %v974, %v1489
      %vm1572 = vcmp.le.f32.partialorder %v1183, %v1558
      %vm1573 = vcmp.le.f32.partialorder %v977, %v1489
      %vm1574 = vcmp.le.f32.partialorder %v1186, %v1558
      %vm1575 = vcmp.le.f32.partialorder %v980, %v1489
      %vm1576 = vcmp.le.f32.partialorder %v1189, %v1558
      %vm1577 = vcmp.le.f32.partialorder %v983, %v1489
      %vm1578 = vcmp.le.f32.partialorder %v1192, %v1558
      %vm1579 = vcmp.le.f32.partialorder %v986, %v1489
      %vm1580 = vcmp.le.f32.partialorder %v1195, %v1558
      %vm1581 = vcmp.le.f32.partialorder %v989, %v1489
      %vm1582 = vcmp.le.f32.partialorder %v1198, %v1558
      %vm1583 = vcmp.le.f32.partialorder %v992, %v1489
      %vm1584 = vcmp.le.f32.partialorder %v1201, %v1558
      %vm1585 = vcmp.le.f32.partialorder %v995, %v1489
      %vm1586 = vcmp.le.f32.partialorder %v1204, %v1558
      %vm1587 = vcmp.le.f32.partialorder %v998, %v1489
      %vm1588 = vcmp.le.f32.partialorder %v1207, %v1558
      %vm1589 = vcmp.le.f32.partialorder %v1001, %v1489
      %vm1590 = vcmp.le.f32.partialorder %v1210, %v1558
      %vm1591 = vcmp.le.f32.partialorder %v1004, %v1489
      %vm1592 = vcmp.le.f32.partialorder %v1213, %v1558
      %vm1593 = vcmp.le.f32.partialorder %v1007, %v1489
      %vm1594 = vcmp.le.f32.partialorder %v1216, %v1558
      %vm1595 = vcmp.le.f32.partialorder %v1010, %v1489
      %vm1596 = vcmp.le.f32.partialorder %v1219, %v1558
      %vm1597 = vcmp.le.f32.partialorder %v1013, %v1489
      %vm1598 = vcmp.le.f32.partialorder %v1222, %v1558
      %vm1599 = vcmp.le.f32.partialorder %v1016, %v1489
      %vm1600 = vcmp.le.f32.partialorder %v1225, %v1558
      %vm1601 = vcmp.le.f32.partialorder %v1019, %v1489
      %vm1602 = vcmp.le.f32.partialorder %v1228, %v1558
      %vm1603 = vcmp.le.f32.partialorder %v1022, %v1489
      %vm1604 = vcmp.le.f32.partialorder %v1231, %v1558
      %vm1605 = vcmp.le.f32.partialorder %v1025, %v1489
      %vm1606 = vcmp.le.f32.partialorder %v1234, %v1558
      %vm1607 = vcmp.le.f32.partialorder %v1028, %v1489
      %vm1608 = vcmp.le.f32.partialorder %v1237, %v1558
      %vm1609 = vcmp.le.f32.partialorder %v1031, %v1489
      %vm1610 = vcmp.le.f32.partialorder %v1240, %v1558
      %vm1611 = vcmp.le.f32.partialorder %v1034, %v1489
      %vm1612 = vcmp.le.f32.partialorder %v1243, %v1558
      %vm1613 = vcmp.le.f32.partialorder %v1037, %v1489
      %vm1614 = vcmp.le.f32.partialorder %v1246, %v1558
      %vm1615 = vcmp.le.f32.partialorder %v1040, %v1489
      %vm1616 = vcmp.le.f32.partialorder %v1249, %v1558
      %vm1617 = vcmp.le.f32.partialorder %v1043, %v1489
      %vm1618 = vcmp.le.f32.partialorder %v1252, %v1558
      %vm1619 = vcmp.le.f32.partialorder %v1046, %v1489
      %vm1620 = vcmp.le.f32.partialorder %v1255, %v1558
      %vm1621 = vcmp.le.f32.partialorder %v1049, %v1489
      %vm1622 = vcmp.le.f32.partialorder %v1258, %v1558
      %vm1623 = vcmp.le.f32.partialorder %v1052, %v1489
      %vm1624 = vcmp.le.f32.partialorder %v1261, %v1558
      %vm1625 = vcmp.le.f32.partialorder %v1055, %v1489
      %vm1626 = vcmp.le.f32.partialorder %v1264, %v1558
      %vm1627 = vcmp.le.f32.partialorder %v1058, %v1489
      %vm1628 = vcmp.le.f32.partialorder %v1267, %v1558
      %vm1629 = vcmp.le.f32.partialorder %v1061, %v1489
      %vm1630 = vcmp.le.f32.partialorder %v1270, %v1558
      %vm1631 = vcmp.le.f32.partialorder %v1064, %v1489
      %vm1632 = vcmp.le.f32.partialorder %v1273, %v1558
      %vm1633 = vcmp.le.f32.partialorder %v1067, %v1489
      %vm1634 = vcmp.le.f32.partialorder %v1276, %v1558
      %vm1635 = vcmp.le.f32.partialorder %v1070, %v1489
      %vm1636 = vcmp.le.f32.partialorder %v1279, %v1558
      %vm1637 = vcmp.le.f32.partialorder %v1073, %v1489
      %vm1638 = vcmp.le.f32.partialorder %v1282, %v1558
      %vm1639 = vcmp.le.f32.partialorder %v1076, %v1489
      %vm1640 = vcmp.le.f32.partialorder %v1285, %v1558
      %vm1641 = vcmp.le.f32.partialorder %v1079, %v1489
      %vm1642 = vcmp.le.f32.partialorder %v1288, %v1558
      %vm1643 = vcmp.le.f32.partialorder %v1082, %v1489
      %vm1644 = vcmp.le.f32.partialorder %v1291, %v1558
      %vm1645 = vcmp.le.f32.partialorder %v1085, %v1489
      %vm1646 = vcmp.le.f32.partialorder %v1294, %v1558
      %vm1647 = vcmp.le.f32.partialorder %v1088, %v1489
      %vm1648 = vcmp.le.f32.partialorder %v1297, %v1558
      %vm1649 = vcmp.le.f32.partialorder %v1091, %v1489
      %vm1650 = vcmp.le.f32.partialorder %v1300, %v1558
      %vm1651 = vcmp.le.f32.partialorder %v1094, %v1489
      %vm1652 = vcmp.le.f32.partialorder %v1303, %v1558
      %vm1653 = vcmp.le.f32.partialorder %v1097, %v1489
      %vm1654 = vcmp.le.f32.partialorder %v1306, %v1558
      %vm1655 = vcmp.le.f32.partialorder %v1100, %v1489
      %vm1656 = vcmp.le.f32.partialorder %v1309, %v1558
      %vm1657 = vcmp.le.f32.partialorder %v1103, %v1489
      %vm1658 = vcmp.le.f32.partialorder %v1312, %v1558
      %vm1659 = vcmp.le.f32.partialorder %v1106, %v1489
      %vm1660 = vcmp.le.f32.partialorder %v1315, %v1558
      %vm1661 = vcmp.le.f32.partialorder %v1109, %v1489
      %vm1662 = vcmp.le.f32.partialorder %v1318, %v1558
      %vm1663 = vcmp.le.f32.partialorder %v1112, %v1489
      %vm1664 = vcmp.le.f32.partialorder %v1321, %v1558
      %vm1665 = vcmp.le.f32.partialorder %v1115, %v1489
      %vm1666 = vcmp.le.f32.partialorder %v1324, %v1558
      %vm1667 = vcmp.le.f32.partialorder %v1118, %v1489
      %vm1668 = vcmp.le.f32.partialorder %v1327, %v1558
      %vm1669 = vcmp.le.f32.partialorder %v1121, %v1489
      %vm1670 = vcmp.le.f32.partialorder %v1330, %v1558
      %vm1671 = vcmp.le.f32.partialorder %v1124, %v1489
      %vm1672 = vcmp.le.f32.partialorder %v1333, %v1558
      %vm1673 = vcmp.le.f32.partialorder %v1127, %v1489
      %vm1674 = vcmp.le.f32.partialorder %v1336, %v1558
      %vm1675 = vcmp.le.f32.partialorder %v1130, %v1489
      %vm1676 = vcmp.le.f32.partialorder %v1339, %v1558
      %vm1677 = vcmp.le.f32.partialorder %v1133, %v1489
      %vm1678 = vcmp.le.f32.partialorder %v1342, %v1558
      %vm1679 = vcmp.le.f32.partialorder %v1136, %v1489
      %vm1680 = vcmp.le.f32.partialorder %v1345, %v1558
      %vm1681 = vcmp.le.f32.partialorder %v1139, %v1489
      %vm1682 = vcmp.le.f32.partialorder %v1348, %v1558
      %vm1683 = vcmp.le.f32.partialorder %v1142, %v1489
      %vm1684 = vcmp.le.f32.partialorder %v1351, %v1558
      %vm1685 = vcmp.le.f32.partialorder %v1145, %v1489
      %vm1686 = vcmp.le.f32.partialorder %v1354, %v1558
      %v1687 = vsel %vm1559, %v1357, 512
      %v1688 = vsel %vm1560, %v1357, 512
      %v1689 = vsel %vm1561, %v1358, 512
      %v1690 = vsel %vm1562, %v1358, 512
      %v1691 = vsel %vm1563, %v1359, 512
      %v1692 = vsel %vm1564, %v1359, 512
      %v1693 = vsel %vm1565, %v1360, 512
      %v1694 = vsel %vm1566, %v1360, 512
      %v1695 = vsel %vm1567, %v1361, 512
      %v1696 = vsel %vm1568, %v1361, 512
      %v1697 = vsel %vm1569, %v1362, 512
      %v1698 = vsel %vm1570, %v1362, 512
      %v1699 = vsel %vm1571, %v1363, 512
      %v1700 = vsel %vm1572, %v1363, 512
      %v1701 = vsel %vm1573, %v1364, 512
      %v1702 = vsel %vm1574, %v1364, 512
      %v1703 = vsel %vm1575, %v1365, 512
      %v1704 = vsel %vm1576, %v1365, 512
      %v1705 = vsel %vm1577, %v1366, 512
      %v1706 = vsel %vm1578, %v1366, 512
      %v1707 = vsel %vm1579, %v1367, 512
      %v1708 = vsel %vm1580, %v1367, 512
      %v1709 = vsel %vm1581, %v1368, 512
      %v1710 = vsel %vm1582, %v1368, 512
      %v1711 = vsel %vm1583, %v1369, 512
      %v1712 = vsel %vm1584, %v1369, 512
      %v1713 = vsel %vm1585, %v1370, 512
      %v1714 = vsel %vm1586, %v1370, 512
      %v1715 = vsel %vm1587, %v1371, 512
      %v1716 = vsel %vm1588, %v1371, 512
      %v1717 = vsel %vm1589, %v1372, 512
      %v1718 = vsel %vm1590, %v1372, 512
      %v1719 = vsel %vm1591, %v1373, 512
      %v1720 = vsel %vm1592, %v1373, 512
      %v1721 = vsel %vm1593, %v1374, 512
      %v1722 = vsel %vm1594, %v1374, 512
      %v1723 = vsel %vm1595, %v1375, 512
      %v1724 = vsel %vm1596, %v1375, 512
      %v1725 = vsel %vm1597, %v1376, 512
      %v1726 = vsel %vm1598, %v1376, 512
      %v1727 = vsel %vm1599, %v1377, 512
      %v1728 = vsel %vm1600, %v1377, 512
      %v1729 = vsel %vm1601, %v1378, 512
      %v1730 = vsel %vm1602, %v1378, 512
      %v1731 = vsel %vm1603, %v1379, 512
      %v1732 = vsel %vm1604, %v1379, 512
      %v1733 = vsel %vm1605, %v1380, 512
      %v1734 = vsel %vm1606, %v1380, 512
      %v1735 = vsel %vm1607, %v1381, 512
      %v1736 = vsel %vm1608, %v1381, 512
      %v1737 = vsel %vm1609, %v1382, 512
      %v1738 = vsel %vm1610, %v1382, 512
      %v1739 = vsel %vm1611, %v1383, 512
      %v1740 = vsel %vm1612, %v1383, 512
      %v1741 = vsel %vm1613, %v1384, 512
      %v1742 = vsel %vm1614, %v1384, 512
      %v1743 = vsel %vm1615, %v1385, 512
      %v1744 = vsel %vm1616, %v1385, 512
      %v1745 = vsel %vm1617, %v1386, 512
      %v1746 = vsel %vm1618, %v1386, 512
      %v1747 = vsel %vm1619, %v1387, 512
      %v1748 = vsel %vm1620, %v1387, 512
      %v1749 = vsel %vm1621, %v1388, 512
      %v1750 = vsel %vm1622, %v1388, 512
      %v1751 = vsel %vm1623, %v1389, 512
      %v1752 = vsel %vm1624, %v1389, 512
      %v1753 = vsel %vm1625, %v1390, 512
      %v1754 = vsel %vm1626, %v1390, 512
      %v1755 = vsel %vm1627, %v1391, 512
      %v1756 = vsel %vm1628, %v1391, 512
      %v1757 = vsel %vm1629, %v1392, 512
      %v1758 = vsel %vm1630, %v1392, 512
      %v1759 = vsel %vm1631, %v1393, 512
      %v1760 = vsel %vm1632, %v1393, 512
      %v1761 = vsel %vm1633, %v1394, 512
      %v1762 = vsel %vm1634, %v1394, 512
      %v1763 = vsel %vm1635, %v1395, 512
      %v1764 = vsel %vm1636, %v1395, 512
      %v1765 = vsel %vm1637, %v1396, 512
      %v1766 = vsel %vm1638, %v1396, 512
      %v1767 = vsel %vm1639, %v1397, 512
      %v1768 = vsel %vm1640, %v1397, 512
      %v1769 = vsel %vm1641, %v1398, 512
      %v1770 = vsel %vm1642, %v1398, 512
      %v1771 = vsel %vm1643, %v1399, 512
      %v1772 = vsel %vm1644, %v1399, 512
      %v1773 = vsel %vm1645, %v1400, 512
      %v1774 = vsel %vm1646, %v1400, 512
      %v1775 = vsel %vm1647, %v1401, 512
      %v1776 = vsel %vm1648, %v1401, 512
      %v1777 = vsel %vm1649, %v1402, 512
      %v1778 = vsel %vm1650, %v1402, 512
      %v1779 = vsel %vm1651, %v1403, 512
      %v1780 = vsel %vm1652, %v1403, 512
      %v1781 = vsel %vm1653, %v1404, 512
      %v1782 = vsel %vm1654, %v1404, 512
      %v1783 = vsel %vm1655, %v1405, 512
      %v1784 = vsel %vm1656, %v1405, 512
      %v1785 = vsel %vm1657, %v1406, 512
      %v1786 = vsel %vm1658, %v1406, 512
      %v1787 = vsel %vm1659, %v1407, 512
      %v1788 = vsel %vm1660, %v1407, 512
      %v1789 = vsel %vm1661, %v1408, 512
      %v1790 = vsel %vm1662, %v1408, 512
      %v1791 = vsel %vm1663, %v1409, 512
      %v1792 = vsel %vm1664, %v1409, 512
      %v1793 = vsel %vm1665, %v1410, 512
      %v1794 = vsel %vm1666, %v1410, 512
      %v1795 = vsel %vm1667, %v1411, 512
      %v1796 = vsel %vm1668, %v1411, 512
      %v1797 = vsel %vm1669, %v1412, 512
      %v1798 = vsel %vm1670, %v1412, 512
      %v1799 = vsel %vm1671, %v1413, 512
      %v1800 = vsel %vm1672, %v1413, 512
      %v1801 = vsel %vm1673, %v1414, 512
      %v1802 = vsel %vm1674, %v1414, 512
      %v1803 = vsel %vm1675, %v1415, 512
      %v1804 = vsel %vm1676, %v1415, 512
      %v1805 = vsel %vm1677, %v1416, 512
      %v1806 = vsel %vm1678, %v1416, 512
      %v1807 = vsel %vm1679, %v1417, 512
      %v1808 = vsel %vm1680, %v1417, 512
      %v1809 = vsel %vm1681, %v1418, 512
      %v1810 = vsel %vm1682, %v1418, 512
      %v1811 = vsel %vm1683, %v1419, 512
      %v1812 = vsel %vm1684, %v1419, 512
      %v1813 = vsel %vm1685, %v1420, 512
      %v1814 = vsel %vm1686, %v1420, 512
      %vm1815 = vcmp.lt.s32.totalorder %v1687, %v1691
      %v1816 = vsel %vm1815, %v1687, %v1691
      %vm1817 = vcmp.lt.s32.totalorder %v1689, %v1693
      %v1818 = vsel %vm1817, %v1689, %v1693
      %vm1819 = vcmp.lt.s32.totalorder %v1816, %v1695
      %v1820 = vsel %vm1819, %v1816, %v1695
      %vm1821 = vcmp.lt.s32.totalorder %v1818, %v1697
      %v1822 = vsel %vm1821, %v1818, %v1697
      %vm1823 = vcmp.lt.s32.totalorder %v1820, %v1699
      %v1824 = vsel %vm1823, %v1820, %v1699
      %vm1825 = vcmp.lt.s32.totalorder %v1822, %v1701
      %v1826 = vsel %vm1825, %v1822, %v1701
      %vm1827 = vcmp.lt.s32.totalorder %v1824, %v1703
      %v1828 = vsel %vm1827, %v1824, %v1703
      %vm1829 = vcmp.lt.s32.totalorder %v1826, %v1705
      %v1830 = vsel %vm1829, %v1826, %v1705
      %vm1831 = vcmp.lt.s32.totalorder %v1828, %v1707
      %v1832 = vsel %vm1831, %v1828, %v1707
      %vm1833 = vcmp.lt.s32.totalorder %v1830, %v1709
      %v1834 = vsel %vm1833, %v1830, %v1709
      %vm1835 = vcmp.lt.s32.totalorder %v1832, %v1711
      %v1836 = vsel %vm1835, %v1832, %v1711
      %vm1837 = vcmp.lt.s32.totalorder %v1834, %v1713
      %v1838 = vsel %vm1837, %v1834, %v1713
      %vm1839 = vcmp.lt.s32.totalorder %v1836, %v1715
      %v1840 = vsel %vm1839, %v1836, %v1715
      %vm1841 = vcmp.lt.s32.totalorder %v1838, %v1717
      %v1842 = vsel %vm1841, %v1838, %v1717
      %vm1843 = vcmp.lt.s32.totalorder %v1840, %v1719
      %v1844 = vsel %vm1843, %v1840, %v1719
      %vm1845 = vcmp.lt.s32.totalorder %v1842, %v1721
      %v1846 = vsel %vm1845, %v1842, %v1721
      %vm1847 = vcmp.lt.s32.totalorder %v1844, %v1723
      %v1848 = vsel %vm1847, %v1844, %v1723
      %vm1849 = vcmp.lt.s32.totalorder %v1846, %v1725
      %v1850 = vsel %vm1849, %v1846, %v1725
      %vm1851 = vcmp.lt.s32.totalorder %v1848, %v1727
      %v1852 = vsel %vm1851, %v1848, %v1727
      %vm1853 = vcmp.lt.s32.totalorder %v1850, %v1729
      %v1854 = vsel %vm1853, %v1850, %v1729
      %vm1855 = vcmp.lt.s32.totalorder %v1852, %v1731
      %v1856 = vsel %vm1855, %v1852, %v1731
      %vm1857 = vcmp.lt.s32.totalorder %v1854, %v1733
      %v1858 = vsel %vm1857, %v1854, %v1733
      %vm1859 = vcmp.lt.s32.totalorder %v1856, %v1735
      %v1860 = vsel %vm1859, %v1856, %v1735
      %vm1861 = vcmp.lt.s32.totalorder %v1858, %v1737
      %v1862 = vsel %vm1861, %v1858, %v1737
      %vm1863 = vcmp.lt.s32.totalorder %v1860, %v1739
      %v1864 = vsel %vm1863, %v1860, %v1739
      %vm1865 = vcmp.lt.s32.totalorder %v1862, %v1741
      %v1866 = vsel %vm1865, %v1862, %v1741
      %vm1867 = vcmp.lt.s32.totalorder %v1864, %v1743
      %v1868 = vsel %vm1867, %v1864, %v1743
      %vm1869 = vcmp.lt.s32.totalorder %v1866, %v1745
      %v1870 = vsel %vm1869, %v1866, %v1745
      %vm1871 = vcmp.lt.s32.totalorder %v1868, %v1747
      %v1872 = vsel %vm1871, %v1868, %v1747
      %vm1873 = vcmp.lt.s32.totalorder %v1870, %v1749
      %v1874 = vsel %vm1873, %v1870, %v1749
      %vm1875 = vcmp.lt.s32.totalorder %v1872, %v1751
      %v1876 = vsel %vm1875, %v1872, %v1751
      %vm1877 = vcmp.lt.s32.totalorder %v1874, %v1753
      %v1878 = vsel %vm1877, %v1874, %v1753
      %vm1879 = vcmp.lt.s32.totalorder %v1876, %v1755
      %v1880 = vsel %vm1879, %v1876, %v1755
      %vm1881 = vcmp.lt.s32.totalorder %v1878, %v1757
      %v1882 = vsel %vm1881, %v1878, %v1757
      %vm1883 = vcmp.lt.s32.totalorder %v1880, %v1759
      %v1884 = vsel %vm1883, %v1880, %v1759
      %vm1885 = vcmp.lt.s32.totalorder %v1882, %v1761
      %v1886 = vsel %vm1885, %v1882, %v1761
      %vm1887 = vcmp.lt.s32.totalorder %v1884, %v1763
      %v1888 = vsel %vm1887, %v1884, %v1763
      %vm1889 = vcmp.lt.s32.totalorder %v1886, %v1765
      %v1890 = vsel %vm1889, %v1886, %v1765
      %vm1891 = vcmp.lt.s32.totalorder %v1888, %v1767
      %v1892 = vsel %vm1891, %v1888, %v1767
      %vm1893 = vcmp.lt.s32.totalorder %v1890, %v1769
      %v1894 = vsel %vm1893, %v1890, %v1769
      %vm1895 = vcmp.lt.s32.totalorder %v1892, %v1771
      %v1896 = vsel %vm1895, %v1892, %v1771
      %vm1897 = vcmp.lt.s32.totalorder %v1894, %v1773
      %v1898 = vsel %vm1897, %v1894, %v1773
      %vm1899 = vcmp.lt.s32.totalorder %v1896, %v1775
      %v1900 = vsel %vm1899, %v1896, %v1775
      %vm1901 = vcmp.lt.s32.totalorder %v1898, %v1777
      %v1902 = vsel %vm1901, %v1898, %v1777
      %vm1903 = vcmp.lt.s32.totalorder %v1900, %v1779
      %v1904 = vsel %vm1903, %v1900, %v1779
      %vm1905 = vcmp.lt.s32.totalorder %v1902, %v1781
      %v1906 = vsel %vm1905, %v1902, %v1781
      %vm1907 = vcmp.lt.s32.totalorder %v1904, %v1783
      %v1908 = vsel %vm1907, %v1904, %v1783
      %vm1909 = vcmp.lt.s32.totalorder %v1906, %v1785
      %v1910 = vsel %vm1909, %v1906, %v1785
      %vm1911 = vcmp.lt.s32.totalorder %v1908, %v1787
      %v1912 = vsel %vm1911, %v1908, %v1787
      %vm1913 = vcmp.lt.s32.totalorder %v1910, %v1789
      %v1914 = vsel %vm1913, %v1910, %v1789
      %vm1915 = vcmp.lt.s32.totalorder %v1912, %v1791
      %v1916 = vsel %vm1915, %v1912, %v1791
      %vm1917 = vcmp.lt.s32.totalorder %v1914, %v1793
      %v1918 = vsel %vm1917, %v1914, %v1793
      %vm1919 = vcmp.lt.s32.totalorder %v1916, %v1795
      %v1920 = vsel %vm1919, %v1916, %v1795
      %vm1921 = vcmp.lt.s32.totalorder %v1918, %v1797
      %v1922 = vsel %vm1921, %v1918, %v1797
      %vm1923 = vcmp.lt.s32.totalorder %v1920, %v1799
      %v1924 = vsel %vm1923, %v1920, %v1799
      %vm1925 = vcmp.lt.s32.totalorder %v1922, %v1801
      %v1926 = vsel %vm1925, %v1922, %v1801
      %vm1927 = vcmp.lt.s32.totalorder %v1924, %v1803
      %v1928 = vsel %vm1927, %v1924, %v1803
      %vm1929 = vcmp.lt.s32.totalorder %v1926, %v1805
      %v1930 = vsel %vm1929, %v1926, %v1805
      %vm1931 = vcmp.lt.s32.totalorder %v1928, %v1807
      %v1932 = vsel %vm1931, %v1928, %v1807
      %vm1933 = vcmp.lt.s32.totalorder %v1930, %v1809
      %v1934 = vsel %vm1933, %v1930, %v1809
      %vm1935 = vcmp.lt.s32.totalorder %v1932, %v1811
      %v1936 = vsel %vm1935, %v1932, %v1811
      %vm1937 = vcmp.lt.s32.totalorder %v1934, %v1813
      %v1938 = vsel %vm1937, %v1934, %v1813
      %vm1939 = vcmp.lt.s32.totalorder %v1936, %v1938
      %v1940 = vsel %vm1939, %v1936, %v1938
      %v1941 = vrot.slane %v1940, 4
      %vm1942 = vcmp.lt.s32.totalorder %v1940, %v1941
      %v1943 = vsel %vm1942, %v1940, %v1941
      %v1944 = vrot.slane %v1943, 2
      %vm1945 = vcmp.lt.s32.totalorder %v1943, %v1944
      %v1946 = vsel %vm1945, %v1943, %v1944
      %v1947 = vrot.slane %v1946, 1
      %vm1948 = vcmp.lt.s32.totalorder %v1946, %v1947
      %v1949 = vsel %vm1948, %v1946, %v1947
      %vm1950 = vcmp.lt.s32.totalorder %v1688, %v1692
      %v1951 = vsel %vm1950, %v1688, %v1692
      %vm1952 = vcmp.lt.s32.totalorder %v1690, %v1694
      %v1953 = vsel %vm1952, %v1690, %v1694
      %vm1954 = vcmp.lt.s32.totalorder %v1951, %v1696
      %v1955 = vsel %vm1954, %v1951, %v1696
      %vm1956 = vcmp.lt.s32.totalorder %v1953, %v1698
      %v1957 = vsel %vm1956, %v1953, %v1698
      %vm1958 = vcmp.lt.s32.totalorder %v1955, %v1700
      %v1959 = vsel %vm1958, %v1955, %v1700
      %vm1960 = vcmp.lt.s32.totalorder %v1957, %v1702
      %v1961 = vsel %vm1960, %v1957, %v1702
      %vm1962 = vcmp.lt.s32.totalorder %v1959, %v1704
      %v1963 = vsel %vm1962, %v1959, %v1704
      %vm1964 = vcmp.lt.s32.totalorder %v1961, %v1706
      %v1965 = vsel %vm1964, %v1961, %v1706
      %vm1966 = vcmp.lt.s32.totalorder %v1963, %v1708
      %v1967 = vsel %vm1966, %v1963, %v1708
      %vm1968 = vcmp.lt.s32.totalorder %v1965, %v1710
      %v1969 = vsel %vm1968, %v1965, %v1710
      %vm1970 = vcmp.lt.s32.totalorder %v1967, %v1712
      %v1971 = vsel %vm1970, %v1967, %v1712
      %vm1972 = vcmp.lt.s32.totalorder %v1969, %v1714
      %v1973 = vsel %vm1972, %v1969, %v1714
      %vm1974 = vcmp.lt.s32.totalorder %v1971, %v1716
      %v1975 = vsel %vm1974, %v1971, %v1716
      %vm1976 = vcmp.lt.s32.totalorder %v1973, %v1718
      %v1977 = vsel %vm1976, %v1973, %v1718
      %vm1978 = vcmp.lt.s32.totalorder %v1975, %v1720
      %v1979 = vsel %vm1978, %v1975, %v1720
      %vm1980 = vcmp.lt.s32.totalorder %v1977, %v1722
      %v1981 = vsel %vm1980, %v1977, %v1722
      %vm1982 = vcmp.lt.s32.totalorder %v1979, %v1724
      %v1983 = vsel %vm1982, %v1979, %v1724
      %vm1984 = vcmp.lt.s32.totalorder %v1981, %v1726
      %v1985 = vsel %vm1984, %v1981, %v1726
      %vm1986 = vcmp.lt.s32.totalorder %v1983, %v1728
      %v1987 = vsel %vm1986, %v1983, %v1728
      %vm1988 = vcmp.lt.s32.totalorder %v1985, %v1730
      %v1989 = vsel %vm1988, %v1985, %v1730
      %vm1990 = vcmp.lt.s32.totalorder %v1987, %v1732
      %v1991 = vsel %vm1990, %v1987, %v1732
      %vm1992 = vcmp.lt.s32.totalorder %v1989, %v1734
      %v1993 = vsel %vm1992, %v1989, %v1734
      %vm1994 = vcmp.lt.s32.totalorder %v1991, %v1736
      %v1995 = vsel %vm1994, %v1991, %v1736
      %vm1996 = vcmp.lt.s32.totalorder %v1993, %v1738
      %v1997 = vsel %vm1996, %v1993, %v1738
      %vm1998 = vcmp.lt.s32.totalorder %v1995, %v1740
      %v1999 = vsel %vm1998, %v1995, %v1740
      %vm2000 = vcmp.lt.s32.totalorder %v1997, %v1742
      %v2001 = vsel %vm2000, %v1997, %v1742
      %vm2002 = vcmp.lt.s32.totalorder %v1999, %v1744
      %v2003 = vsel %vm2002, %v1999, %v1744
      %vm2004 = vcmp.lt.s32.totalorder %v2001, %v1746
      %v2005 = vsel %vm2004, %v2001, %v1746
      %vm2006 = vcmp.lt.s32.totalorder %v2003, %v1748
      %v2007 = vsel %vm2006, %v2003, %v1748
      %vm2008 = vcmp.lt.s32.totalorder %v2005, %v1750
      %v2009 = vsel %vm2008, %v2005, %v1750
      %vm2010 = vcmp.lt.s32.totalorder %v2007, %v1752
      %v2011 = vsel %vm2010, %v2007, %v1752
      %vm2012 = vcmp.lt.s32.totalorder %v2009, %v1754
      %v2013 = vsel %vm2012, %v2009, %v1754
      %vm2014 = vcmp.lt.s32.totalorder %v2011, %v1756
      %v2015 = vsel %vm2014, %v2011, %v1756
      %vm2016 = vcmp.lt.s32.totalorder %v2013, %v1758
      %v2017 = vsel %vm2016, %v2013, %v1758
      %vm2018 = vcmp.lt.s32.totalorder %v2015, %v1760
      %v2019 = vsel %vm2018, %v2015, %v1760
      %vm2020 = vcmp.lt.s32.totalorder %v2017, %v1762
      %v2021 = vsel %vm2020, %v2017, %v1762
      %vm2022 = vcmp.lt.s32.totalorder %v2019, %v1764
      %v2023 = vsel %vm2022, %v2019, %v1764
      %vm2024 = vcmp.lt.s32.totalorder %v2021, %v1766
      %v2025 = vsel %vm2024, %v2021, %v1766
      %vm2026 = vcmp.lt.s32.totalorder %v2023, %v1768
      %v2027 = vsel %vm2026, %v2023, %v1768
      %vm2028 = vcmp.lt.s32.totalorder %v2025, %v1770
      %v2029 = vsel %vm2028, %v2025, %v1770
      %vm2030 = vcmp.lt.s32.totalorder %v2027, %v1772
      %v2031 = vsel %vm2030, %v2027, %v1772
      %vm2032 = vcmp.lt.s32.totalorder %v2029, %v1774
      %v2033 = vsel %vm2032, %v2029, %v1774
      %vm2034 = vcmp.lt.s32.totalorder %v2031, %v1776
      %v2035 = vsel %vm2034, %v2031, %v1776
      %vm2036 = vcmp.lt.s32.totalorder %v2033, %v1778
      %v2037 = vsel %vm2036, %v2033, %v1778
      %vm2038 = vcmp.lt.s32.totalorder %v2035, %v1780
      %v2039 = vsel %vm2038, %v2035, %v1780
      %vm2040 = vcmp.lt.s32.totalorder %v2037, %v1782
      %v2041 = vsel %vm2040, %v2037, %v1782
      %vm2042 = vcmp.lt.s32.totalorder %v2039, %v1784
      %v2043 = vsel %vm2042, %v2039, %v1784
      %vm2044 = vcmp.lt.s32.totalorder %v2041, %v1786
      %v2045 = vsel %vm2044, %v2041, %v1786
      %vm2046 = vcmp.lt.s32.totalorder %v2043, %v1788
      %v2047 = vsel %vm2046, %v2043, %v1788
      %vm2048 = vcmp.lt.s32.totalorder %v2045, %v1790
      %v2049 = vsel %vm2048, %v2045, %v1790
      %vm2050 = vcmp.lt.s32.totalorder %v2047, %v1792
      %v2051 = vsel %vm2050, %v2047, %v1792
      %vm2052 = vcmp.lt.s32.totalorder %v2049, %v1794
      %v2053 = vsel %vm2052, %v2049, %v1794
      %vm2054 = vcmp.lt.s32.totalorder %v2051, %v1796
      %v2055 = vsel %vm2054, %v2051, %v1796
      %vm2056 = vcmp.lt.s32.totalorder %v2053, %v1798
      %v2057 = vsel %vm2056, %v2053, %v1798
      %vm2058 = vcmp.lt.s32.totalorder %v2055, %v1800
      %v2059 = vsel %vm2058, %v2055, %v1800
      %vm2060 = vcmp.lt.s32.totalorder %v2057, %v1802
      %v2061 = vsel %vm2060, %v2057, %v1802
      %vm2062 = vcmp.lt.s32.totalorder %v2059, %v1804
      %v2063 = vsel %vm2062, %v2059, %v1804
      %vm2064 = vcmp.lt.s32.totalorder %v2061, %v1806
      %v2065 = vsel %vm2064, %v2061, %v1806
      %vm2066 = vcmp.lt.s32.totalorder %v2063, %v1808
      %v2067 = vsel %vm2066, %v2063, %v1808
      %vm2068 = vcmp.lt.s32.totalorder %v2065, %v1810
      %v2069 = vsel %vm2068, %v2065, %v1810
      %vm2070 = vcmp.lt.s32.totalorder %v2067, %v1812
      %v2071 = vsel %vm2070, %v2067, %v1812
      %vm2072 = vcmp.lt.s32.totalorder %v2069, %v1814
      %v2073 = vsel %vm2072, %v2069, %v1814
      %vm2074 = vcmp.lt.s32.totalorder %v2071, %v2073
      %v2075 = vsel %vm2074, %v2071, %v2073
      %v2076 = vrot.slane %v2075, 4
      %vm2077 = vcmp.lt.s32.totalorder %v2075, %v2076
      %v2078 = vsel %vm2077, %v2075, %v2076
      %v2079 = vrot.slane %v2078, 2
      %vm2080 = vcmp.lt.s32.totalorder %v2078, %v2079
      %v2081 = vsel %vm2080, %v2078, %v2079
      %v2082 = vrot.slane %v2081, 1
      %vm2083 = vcmp.lt.s32.totalorder %v2081, %v2082
      %v2084 = vsel %vm2083, %v2081, %v2082
      %vm2085 = vcmp.eq.s32.totalorder %v1687, %v1949
      %vm2086 = vcmp.eq.s32.totalorder %v1688, %v2084
      %vm2087 = vcmp.eq.s32.totalorder %v1689, %v1949
      %vm2088 = vcmp.eq.s32.totalorder %v1690, %v2084
      %vm2089 = vcmp.eq.s32.totalorder %v1691, %v1949
      %vm2090 = vcmp.eq.s32.totalorder %v1692, %v2084
      %vm2091 = vcmp.eq.s32.totalorder %v1693, %v1949
      %vm2092 = vcmp.eq.s32.totalorder %v1694, %v2084
      %vm2093 = vcmp.eq.s32.totalorder %v1695, %v1949
      %vm2094 = vcmp.eq.s32.totalorder %v1696, %v2084
      %vm2095 = vcmp.eq.s32.totalorder %v1697, %v1949
      %vm2096 = vcmp.eq.s32.totalorder %v1698, %v2084
      %vm2097 = vcmp.eq.s32.totalorder %v1699, %v1949
      %vm2098 = vcmp.eq.s32.totalorder %v1700, %v2084
      %vm2099 = vcmp.eq.s32.totalorder %v1701, %v1949
      %vm2100 = vcmp.eq.s32.totalorder %v1702, %v2084
      %vm2101 = vcmp.eq.s32.totalorder %v1703, %v1949
      %vm2102 = vcmp.eq.s32.totalorder %v1704, %v2084
      %vm2103 = vcmp.eq.s32.totalorder %v1705, %v1949
      %vm2104 = vcmp.eq.s32.totalorder %v1706, %v2084
      %vm2105 = vcmp.eq.s32.totalorder %v1707, %v1949
      %vm2106 = vcmp.eq.s32.totalorder %v1708, %v2084
      %vm2107 = vcmp.eq.s32.totalorder %v1709, %v1949
      %vm2108 = vcmp.eq.s32.totalorder %v1710, %v2084
      %vm2109 = vcmp.eq.s32.totalorder %v1711, %v1949
      %vm2110 = vcmp.eq.s32.totalorder %v1712, %v2084
      %vm2111 = vcmp.eq.s32.totalorder %v1713, %v1949
      %vm2112 = vcmp.eq.s32.totalorder %v1714, %v2084
      %vm2113 = vcmp.eq.s32.totalorder %v1715, %v1949
      %vm2114 = vcmp.eq.s32.totalorder %v1716, %v2084
      %vm2115 = vcmp.eq.s32.totalorder %v1717, %v1949
      %vm2116 = vcmp.eq.s32.totalorder %v1718, %v2084
      %vm2117 = vcmp.eq.s32.totalorder %v1719, %v1949
      %vm2118 = vcmp.eq.s32.totalorder %v1720, %v2084
      %vm2119 = vcmp.eq.s32.totalorder %v1721, %v1949
      %vm2120 = vcmp.eq.s32.totalorder %v1722, %v2084
      %vm2121 = vcmp.eq.s32.totalorder %v1723, %v1949
      %vm2122 = vcmp.eq.s32.totalorder %v1724, %v2084
      %vm2123 = vcmp.eq.s32.totalorder %v1725, %v1949
      %vm2124 = vcmp.eq.s32.totalorder %v1726, %v2084
      %vm2125 = vcmp.eq.s32.totalorder %v1727, %v1949
      %vm2126 = vcmp.eq.s32.totalorder %v1728, %v2084
      %vm2127 = vcmp.eq.s32.totalorder %v1729, %v1949
      %vm2128 = vcmp.eq.s32.totalorder %v1730, %v2084
      %vm2129 = vcmp.eq.s32.totalorder %v1731, %v1949
      %vm2130 = vcmp.eq.s32.totalorder %v1732, %v2084
      %vm2131 = vcmp.eq.s32.totalorder %v1733, %v1949
      %vm2132 = vcmp.eq.s32.totalorder %v1734, %v2084
      %vm2133 = vcmp.eq.s32.totalorder %v1735, %v1949
      %vm2134 = vcmp.eq.s32.totalorder %v1736, %v2084
      %vm2135 = vcmp.eq.s32.totalorder %v1737, %v1949
      %vm2136 = vcmp.eq.s32.totalorder %v1738, %v2084
      %vm2137 = vcmp.eq.s32.totalorder %v1739, %v1949
      %vm2138 = vcmp.eq.s32.totalorder %v1740, %v2084
      %vm2139 = vcmp.eq.s32.totalorder %v1741, %v1949
      %vm2140 = vcmp.eq.s32.totalorder %v1742, %v2084
      %vm2141 = vcmp.eq.s32.totalorder %v1743, %v1949
      %vm2142 = vcmp.eq.s32.totalorder %v1744, %v2084
      %vm2143 = vcmp.eq.s32.totalorder %v1745, %v1949
      %vm2144 = vcmp.eq.s32.totalorder %v1746, %v2084
      %vm2145 = vcmp.eq.s32.totalorder %v1747, %v1949
      %vm2146 = vcmp.eq.s32.totalorder %v1748, %v2084
      %vm2147 = vcmp.eq.s32.totalorder %v1749, %v1949
      %vm2148 = vcmp.eq.s32.totalorder %v1750, %v2084
      %vm2149 = vcmp.eq.s32.totalorder %v1751, %v1949
      %vm2150 = vcmp.eq.s32.totalorder %v1752, %v2084
      %vm2151 = vcmp.eq.s32.totalorder %v1753, %v1949
      %vm2152 = vcmp.eq.s32.totalorder %v1754, %v2084
      %vm2153 = vcmp.eq.s32.totalorder %v1755, %v1949
      %vm2154 = vcmp.eq.s32.totalorder %v1756, %v2084
      %vm2155 = vcmp.eq.s32.totalorder %v1757, %v1949
      %vm2156 = vcmp.eq.s32.totalorder %v1758, %v2084
      %vm2157 = vcmp.eq.s32.totalorder %v1759, %v1949
      %vm2158 = vcmp.eq.s32.totalorder %v1760, %v2084
      %vm2159 = vcmp.eq.s32.totalorder %v1761, %v1949
      %vm2160 = vcmp.eq.s32.totalorder %v1762, %v2084
      %vm2161 = vcmp.eq.s32.totalorder %v1763, %v1949
      %vm2162 = vcmp.eq.s32.totalorder %v1764, %v2084
      %vm2163 = vcmp.eq.s32.totalorder %v1765, %v1949
      %vm2164 = vcmp.eq.s32.totalorder %v1766, %v2084
      %vm2165 = vcmp.eq.s32.totalorder %v1767, %v1949
      %vm2166 = vcmp.eq.s32.totalorder %v1768, %v2084
      %vm2167 = vcmp.eq.s32.totalorder %v1769, %v1949
      %vm2168 = vcmp.eq.s32.totalorder %v1770, %v2084
      %vm2169 = vcmp.eq.s32.totalorder %v1771, %v1949
      %vm2170 = vcmp.eq.s32.totalorder %v1772, %v2084
      %vm2171 = vcmp.eq.s32.totalorder %v1773, %v1949
      %vm2172 = vcmp.eq.s32.totalorder %v1774, %v2084
      %vm2173 = vcmp.eq.s32.totalorder %v1775, %v1949
      %vm2174 = vcmp.eq.s32.totalorder %v1776, %v2084
      %vm2175 = vcmp.eq.s32.totalorder %v1777, %v1949
      %vm2176 = vcmp.eq.s32.totalorder %v1778, %v2084
      %vm2177 = vcmp.eq.s32.totalorder %v1779, %v1949
      %vm2178 = vcmp.eq.s32.totalorder %v1780, %v2084
      %vm2179 = vcmp.eq.s32.totalorder %v1781, %v1949
      %vm2180 = vcmp.eq.s32.totalorder %v1782, %v2084
      %vm2181 = vcmp.eq.s32.totalorder %v1783, %v1949
      %vm2182 = vcmp.eq.s32.totalorder %v1784, %v2084
      %vm2183 = vcmp.eq.s32.totalorder %v1785, %v1949
      %vm2184 = vcmp.eq.s32.totalorder %v1786, %v2084
      %vm2185 = vcmp.eq.s32.totalorder %v1787, %v1949
      %vm2186 = vcmp.eq.s32.totalorder %v1788, %v2084
      %vm2187 = vcmp.eq.s32.totalorder %v1789, %v1949
      %vm2188 = vcmp.eq.s32.totalorder %v1790, %v2084
      %vm2189 = vcmp.eq.s32.totalorder %v1791, %v1949
      %vm2190 = vcmp.eq.s32.totalorder %v1792, %v2084
      %vm2191 = vcmp.eq.s32.totalorder %v1793, %v1949
      %vm2192 = vcmp.eq.s32.totalorder %v1794, %v2084
      %vm2193 = vcmp.eq.s32.totalorder %v1795, %v1949
      %vm2194 = vcmp.eq.s32.totalorder %v1796, %v2084
      %vm2195 = vcmp.eq.s32.totalorder %v1797, %v1949
      %vm2196 = vcmp.eq.s32.totalorder %v1798, %v2084
      %vm2197 = vcmp.eq.s32.totalorder %v1799, %v1949
      %vm2198 = vcmp.eq.s32.totalorder %v1800, %v2084
      %vm2199 = vcmp.eq.s32.totalorder %v1801, %v1949
      %vm2200 = vcmp.eq.s32.totalorder %v1802, %v2084
      %vm2201 = vcmp.eq.s32.totalorder %v1803, %v1949
      %vm2202 = vcmp.eq.s32.totalorder %v1804, %v2084
      %vm2203 = vcmp.eq.s32.totalorder %v1805, %v1949
      %vm2204 = vcmp.eq.s32.totalorder %v1806, %v2084
      %vm2205 = vcmp.eq.s32.totalorder %v1807, %v1949
      %vm2206 = vcmp.eq.s32.totalorder %v1808, %v2084
      %vm2207 = vcmp.eq.s32.totalorder %v1809, %v1949
      %vm2208 = vcmp.eq.s32.totalorder %v1810, %v2084
      %vm2209 = vcmp.eq.s32.totalorder %v1811, %v1949
      %vm2210 = vcmp.eq.s32.totalorder %v1812, %v2084
      %vm2211 = vcmp.eq.s32.totalorder %v1813, %v1949
      %vm2212 = vcmp.eq.s32.totalorder %v1814, %v2084
      %v2213 = vsel %vm2085, 1, 0
      %v2214 = vsel %vm2086, 1, 0
      %v2215 = vsel %vm2087, 1, 0
      %v2216 = vsel %vm2088, 1, 0
      %v2217 = vsel %vm2089, 1, 0
      %v2218 = vsel %vm2090, 1, 0
      %v2219 = vsel %vm2091, 1, 0
      %v2220 = vsel %vm2092, 1, 0
      %v2221 = vsel %vm2093, 1, 0
      %v2222 = vsel %vm2094, 1, 0
      %v2223 = vsel %vm2095, 1, 0
      %v2224 = vsel %vm2096, 1, 0
      %v2225 = vsel %vm2097, 1, 0
      %v2226 = vsel %vm2098, 1, 0
      %v2227 = vsel %vm2099, 1, 0
      %v2228 = vsel %vm2100, 1, 0
      %v2229 = vsel %vm2101, 1, 0
      %v2230 = vsel %vm2102, 1, 0
      %v2231 = vsel %vm2103, 1, 0
      %v2232 = vsel %vm2104, 1, 0
      %v2233 = vsel %vm2105, 1, 0
      %v2234 = vsel %vm2106, 1, 0
      %v2235 = vsel %vm2107, 1, 0
      %v2236 = vsel %vm2108, 1, 0
      %v2237 = vsel %vm2109, 1, 0
      %v2238 = vsel %vm2110, 1, 0
      %v2239 = vsel %vm2111, 1, 0
      %v2240 = vsel %vm2112, 1, 0
      %v2241 = vsel %vm2113, 1, 0
      %v2242 = vsel %vm2114, 1, 0
      %v2243 = vsel %vm2115, 1, 0
      %v2244 = vsel %vm2116, 1, 0
      %v2245 = vsel %vm2117, 1, 0
      %v2246 = vsel %vm2118, 1, 0
      %v2247 = vsel %vm2119, 1, 0
      %v2248 = vsel %vm2120, 1, 0
      %v2249 = vsel %vm2121, 1, 0
      %v2250 = vsel %vm2122, 1, 0
      %v2251 = vsel %vm2123, 1, 0
      %v2252 = vsel %vm2124, 1, 0
      %v2253 = vsel %vm2125, 1, 0
      %v2254 = vsel %vm2126, 1, 0
      %v2255 = vsel %vm2127, 1, 0
      %v2256 = vsel %vm2128, 1, 0
      %v2257 = vsel %vm2129, 1, 0
      %v2258 = vsel %vm2130, 1, 0
      %v2259 = vsel %vm2131, 1, 0
      %v2260 = vsel %vm2132, 1, 0
      %v2261 = vsel %vm2133, 1, 0
      %v2262 = vsel %vm2134, 1, 0
      %v2263 = vsel %vm2135, 1, 0
      %v2264 = vsel %vm2136, 1, 0
      %v2265 = vsel %vm2137, 1, 0
      %v2266 = vsel %vm2138, 1, 0
      %v2267 = vsel %vm2139, 1, 0
      %v2268 = vsel %vm2140, 1, 0
      %v2269 = vsel %vm2141, 1, 0
      %v2270 = vsel %vm2142, 1, 0
      %v2271 = vsel %vm2143, 1, 0
      %v2272 = vsel %vm2144, 1, 0
      %v2273 = vsel %vm2145, 1, 0
      %v2274 = vsel %vm2146, 1, 0
      %v2275 = vsel %vm2147, 1, 0
      %v2276 = vsel %vm2148, 1, 0
      %v2277 = vsel %vm2149, 1, 0
      %v2278 = vsel %vm2150, 1, 0
      %v2279 = vsel %vm2151, 1, 0
      %v2280 = vsel %vm2152, 1, 0
      %v2281 = vsel %vm2153, 1, 0
      %v2282 = vsel %vm2154, 1, 0
      %v2283 = vsel %vm2155, 1, 0
      %v2284 = vsel %vm2156, 1, 0
      %v2285 = vsel %vm2157, 1, 0
      %v2286 = vsel %vm2158, 1, 0
      %v2287 = vsel %vm2159, 1, 0
      %v2288 = vsel %vm2160, 1, 0
      %v2289 = vsel %vm2161, 1, 0
      %v2290 = vsel %vm2162, 1, 0
      %v2291 = vsel %vm2163, 1, 0
      %v2292 = vsel %vm2164, 1, 0
      %v2293 = vsel %vm2165, 1, 0
      %v2294 = vsel %vm2166, 1, 0
      %v2295 = vsel %vm2167, 1, 0
      %v2296 = vsel %vm2168, 1, 0
      %v2297 = vsel %vm2169, 1, 0
      %v2298 = vsel %vm2170, 1, 0
      %v2299 = vsel %vm2171, 1, 0
      %v2300 = vsel %vm2172, 1, 0
      %v2301 = vsel %vm2173, 1, 0
      %v2302 = vsel %vm2174, 1, 0
      %v2303 = vsel %vm2175, 1, 0
      %v2304 = vsel %vm2176, 1, 0
      %v2305 = vsel %vm2177, 1, 0
      %v2306 = vsel %vm2178, 1, 0
      %v2307 = vsel %vm2179, 1, 0
      %v2308 = vsel %vm2180, 1, 0
      %v2309 = vsel %vm2181, 1, 0
      %v2310 = vsel %vm2182, 1, 0
      %v2311 = vsel %vm2183, 1, 0
      %v2312 = vsel %vm2184, 1, 0
      %v2313 = vsel %vm2185, 1, 0
      %v2314 = vsel %vm2186, 1, 0
      %v2315 = vsel %vm2187, 1, 0
      %v2316 = vsel %vm2188, 1, 0
      %v2317 = vsel %vm2189, 1, 0
      %v2318 = vsel %vm2190, 1, 0
      %v2319 = vsel %vm2191, 1, 0
      %v2320 = vsel %vm2192, 1, 0
      %v2321 = vsel %vm2193, 1, 0
      %v2322 = vsel %vm2194, 1, 0
      %v2323 = vsel %vm2195, 1, 0
      %v2324 = vsel %vm2196, 1, 0
      %v2325 = vsel %vm2197, 1, 0
      %v2326 = vsel %vm2198, 1, 0
      %v2327 = vsel %vm2199, 1, 0
      %v2328 = vsel %vm2200, 1, 0
      %v2329 = vsel %vm2201, 1, 0
      %v2330 = vsel %vm2202, 1, 0
      %v2331 = vsel %vm2203, 1, 0
      %v2332 = vsel %vm2204, 1, 0
      %v2333 = vsel %vm2205, 1, 0
      %v2334 = vsel %vm2206, 1, 0
      %v2335 = vsel %vm2207, 1, 0
      %v2336 = vsel %vm2208, 1, 0
      %v2337 = vsel %vm2209, 1, 0
      %v2338 = vsel %vm2210, 1, 0
      %v2339 = vsel %vm2211, 1, 0
      %v2340 = vsel %vm2212, 1, 0
      %v2341 = vcvt.s32.f32 %v2213
      %v2342 = vcvt.s32.f32 %v2214
      %v2343 = vcvt.s32.f32 %v2215
      %v2344 = vcvt.s32.f32 %v2216
      %v2345 = vcvt.s32.f32 %v2217
      %v2346 = vcvt.s32.f32 %v2218
      %v2347 = vcvt.s32.f32 %v2219
      %v2348 = vcvt.s32.f32 %v2220
      %v2349 = vcvt.s32.f32 %v2221
      %v2350 = vcvt.s32.f32 %v2222
      %v2351 = vcvt.s32.f32 %v2223
      %v2352 = vcvt.s32.f32 %v2224
      %v2353 = vcvt.s32.f32 %v2225
      %v2354 = vcvt.s32.f32 %v2226
      %v2355 = vcvt.s32.f32 %v2227
      %v2356 = vcvt.s32.f32 %v2228
      %v2357 = vcvt.s32.f32 %v2229
      %v2358 = vcvt.s32.f32 %v2230
      %v2359 = vcvt.s32.f32 %v2231
      %v2360 = vcvt.s32.f32 %v2232
      %v2361 = vcvt.s32.f32 %v2233
      %v2362 = vcvt.s32.f32 %v2234
      %v2363 = vcvt.s32.f32 %v2235
      %v2364 = vcvt.s32.f32 %v2236
      %v2365 = vcvt.s32.f32 %v2237
      %v2366 = vcvt.s32.f32 %v2238
      %v2367 = vcvt.s32.f32 %v2239
      %v2368 = vcvt.s32.f32 %v2240
      %v2369 = vcvt.s32.f32 %v2241
      %v2370 = vcvt.s32.f32 %v2242
      %v2371 = vcvt.s32.f32 %v2243
      %v2372 = vcvt.s32.f32 %v2244
      %v2373 = vcvt.s32.f32 %v2245
      %v2374 = vcvt.s32.f32 %v2246
      %v2375 = vcvt.s32.f32 %v2247
      %v2376 = vcvt.s32.f32 %v2248
      %v2377 = vcvt.s32.f32 %v2249
      %v2378 = vcvt.s32.f32 %v2250
      %v2379 = vcvt.s32.f32 %v2251
      %v2380 = vcvt.s32.f32 %v2252
      %v2381 = vcvt.s32.f32 %v2253
      %v2382 = vcvt.s32.f32 %v2254
      %v2383 = vcvt.s32.f32 %v2255
      %v2384 = vcvt.s32.f32 %v2256
      %v2385 = vcvt.s32.f32 %v2257
      %v2386 = vcvt.s32.f32 %v2258
      %v2387 = vcvt.s32.f32 %v2259
      %v2388 = vcvt.s32.f32 %v2260
      %v2389 = vcvt.s32.f32 %v2261
      %v2390 = vcvt.s32.f32 %v2262
      %v2391 = vcvt.s32.f32 %v2263
      %v2392 = vcvt.s32.f32 %v2264
      %v2393 = vcvt.s32.f32 %v2265
      %v2394 = vcvt.s32.f32 %v2266
      %v2395 = vcvt.s32.f32 %v2267
      %v2396 = vcvt.s32.f32 %v2268
      %v2397 = vcvt.s32.f32 %v2269
      %v2398 = vcvt.s32.f32 %v2270
      %v2399 = vcvt.s32.f32 %v2271
      %v2400 = vcvt.s32.f32 %v2272
      %v2401 = vcvt.s32.f32 %v2273
      %v2402 = vcvt.s32.f32 %v2274
      %v2403 = vcvt.s32.f32 %v2275
      %v2404 = vcvt.s32.f32 %v2276
      %v2405 = vcvt.s32.f32 %v2277
      %v2406 = vcvt.s32.f32 %v2278
      %v2407 = vcvt.s32.f32 %v2279
      %v2408 = vcvt.s32.f32 %v2280
      %v2409 = vcvt.s32.f32 %v2281
      %v2410 = vcvt.s32.f32 %v2282
      %v2411 = vcvt.s32.f32 %v2283
      %v2412 = vcvt.s32.f32 %v2284
      %v2413 = vcvt.s32.f32 %v2285
      %v2414 = vcvt.s32.f32 %v2286
      %v2415 = vcvt.s32.f32 %v2287
      %v2416 = vcvt.s32.f32 %v2288
      %v2417 = vcvt.s32.f32 %v2289
      %v2418 = vcvt.s32.f32 %v2290
      %v2419 = vcvt.s32.f32 %v2291
      %v2420 = vcvt.s32.f32 %v2292
      %v2421 = vcvt.s32.f32 %v2293
      %v2422 = vcvt.s32.f32 %v2294
      %v2423 = vcvt.s32.f32 %v2295
      %v2424 = vcvt.s32.f32 %v2296
      %v2425 = vcvt.s32.f32 %v2297
      %v2426 = vcvt.s32.f32 %v2298
      %v2427 = vcvt.s32.f32 %v2299
      %v2428 = vcvt.s32.f32 %v2300
      %v2429 = vcvt.s32.f32 %v2301
      %v2430 = vcvt.s32.f32 %v2302
      %v2431 = vcvt.s32.f32 %v2303
      %v2432 = vcvt.s32.f32 %v2304
      %v2433 = vcvt.s32.f32 %v2305
      %v2434 = vcvt.s32.f32 %v2306
      %v2435 = vcvt.s32.f32 %v2307
      %v2436 = vcvt.s32.f32 %v2308
      %v2437 = vcvt.s32.f32 %v2309
      %v2438 = vcvt.s32.f32 %v2310
      %v2439 = vcvt.s32.f32 %v2311
      %v2440 = vcvt.s32.f32 %v2312
      %v2441 = vcvt.s32.f32 %v2313
      %v2442 = vcvt.s32.f32 %v2314
      %v2443 = vcvt.s32.f32 %v2315
      %v2444 = vcvt.s32.f32 %v2316
      %v2445 = vcvt.s32.f32 %v2317
      %v2446 = vcvt.s32.f32 %v2318
      %v2447 = vcvt.s32.f32 %v2319
      %v2448 = vcvt.s32.f32 %v2320
      %v2449 = vcvt.s32.f32 %v2321
      %v2450 = vcvt.s32.f32 %v2322
      %v2451 = vcvt.s32.f32 %v2323
      %v2452 = vcvt.s32.f32 %v2324
      %v2453 = vcvt.s32.f32 %v2325
      %v2454 = vcvt.s32.f32 %v2326
      %v2455 = vcvt.s32.f32 %v2327
      %v2456 = vcvt.s32.f32 %v2328
      %v2457 = vcvt.s32.f32 %v2329
      %v2458 = vcvt.s32.f32 %v2330
      %v2459 = vcvt.s32.f32 %v2331
      %v2460 = vcvt.s32.f32 %v2332
      %v2461 = vcvt.s32.f32 %v2333
      %v2462 = vcvt.s32.f32 %v2334
      %v2463 = vcvt.s32.f32 %v2335
      %v2464 = vcvt.s32.f32 %v2336
      %v2465 = vcvt.s32.f32 %v2337
      %v2466 = vcvt.s32.f32 %v2338
      %v2467 = vcvt.s32.f32 %v2339
      %v2468 = vcvt.s32.f32 %v2340
      %v2469 = vld [vmem:[%s2] sm:$0xff]
      %v2470 = vld [vmem:[%s2 + $0x8] sm:$0xff]
      %v2471 = vld [vmem:[%s2 + $0x10] sm:$0xff]
      %v2472 = vld [vmem:[%s2 + $0x18] sm:$0xff]
      %v2473 = vld [vmem:[%s2 + $0x20] sm:$0xff]
      %v2474 = vld [vmem:[%s2 + $0x28] sm:$0xff]
      %v2475 = vld [vmem:[%s2 + $0x30] sm:$0xff]
      %v2476 = vld [vmem:[%s2 + $0x38] sm:$0xff]
      %v2477 = vld [vmem:[%s2 + $0x40] sm:$0xff]
      %v2478 = vld [vmem:[%s2 + $0x48] sm:$0xff]
      %v2479 = vld [vmem:[%s2 + $0x50] sm:$0xff]
      %v2480 = vld [vmem:[%s2 + $0x58] sm:$0xff]
      %v2481 = vld [vmem:[%s2 + $0x60] sm:$0xff]
      %v2482 = vld [vmem:[%s2 + $0x68] sm:$0xff]
      %v2483 = vld [vmem:[%s2 + $0x70] sm:$0xff]
      %v2484 = vld [vmem:[%s2 + $0x78] sm:$0xff]
      %v2485 = vld [vmem:[%s2 + $0x80] sm:$0xff]
      %v2486 = vld [vmem:[%s2 + $0x88] sm:$0xff]
      %v2487 = vld [vmem:[%s2 + $0x90] sm:$0xff]
      %v2488 = vld [vmem:[%s2 + $0x98] sm:$0xff]
      %v2489 = vld [vmem:[%s2 + $0xa0] sm:$0xff]
      %v2490 = vld [vmem:[%s2 + $0xa8] sm:$0xff]
      %v2491 = vld [vmem:[%s2 + $0xb0] sm:$0xff]
      %v2492 = vld [vmem:[%s2 + $0xb8] sm:$0xff]
      %v2493 = vld [vmem:[%s2 + $0xc0] sm:$0xff]
      %v2494 = vld [vmem:[%s2 + $0xc8] sm:$0xff]
      %v2495 = vld [vmem:[%s2 + $0xd0] sm:$0xff]
      %v2496 = vld [vmem:[%s2 + $0xd8] sm:$0xff]
      %v2497 = vld [vmem:[%s2 + $0xe0] sm:$0xff]
      %v2498 = vld [vmem:[%s2 + $0xe8] sm:$0xff]
      %v2499 = vld [vmem:[%s2 + $0xf0] sm:$0xff]
      %v2500 = vld [vmem:[%s2 + $0xf8] sm:$0xff]
      %2501 = vmatpush.msra.mxu0 %v2371
      %2502 = vmatpush.msra.mxu0 %v2369
      %2503 = vmatpush.msra.mxu0 %v2367
      %2504 = vmatpush.msra.mxu0 %v2365
      %2505 = vmatpush.msra.mxu0 %v2363
      %2506 = vmatpush.msra.mxu0 %v2361
      %2507 = vmatpush.msra.mxu0 %v2359
      %2508 = vmatpush.msra.mxu0 %v2357
      %2509 = vmatpush.msra.mxu0 %v2355
      %2510 = vmatpush.msra.mxu0 %v2353
      %2511 = vmatpush.msra.mxu0 %v2351
      %2512 = vmatpush.msra.mxu0 %v2349
      %2513 = vmatpush.msra.mxu0 %v2347
      %2514 = vmatpush.msra.mxu0 %v2345
      %2515 = vmatpush.msra.mxu0 %v2343
      %2516 = vmatpush.msra.mxu0 %v2341
      %2517 = vmatmul.f32.gmra.mxu0 %v2469
      %v2518 = vpop.f32.mrf.mxu0
      %v2519 = vadd.f32 0.0, %v2518
      %2520 = vmatmul.f32.gmra.mxu0 %v2473
      %v2521 = vpop.f32.mrf.mxu0
      %v2522 = vadd.f32 0.0, %v2521
      %2523 = vmatmul.f32.gmra.mxu0 %v2477
      %v2524 = vpop.f32.mrf.mxu0
      %v2525 = vadd.f32 0.0, %v2524
      %2526 = vmatmul.f32.gmra.mxu0 %v2481
      %v2527 = vpop.f32.mrf.mxu0
      %v2528 = vadd.f32 0.0, %v2527
      %2529 = vmatmul.f32.gmra.mxu0 %v2485
      %v2530 = vpop.f32.mrf.mxu0
      %v2531 = vadd.f32 0.0, %v2530
      %2532 = vmatmul.f32.gmra.mxu0 %v2489
      %v2533 = vpop.f32.mrf.mxu0
      %v2534 = vadd.f32 0.0, %v2533
      %2535 = vmatmul.f32.gmra.mxu0 %v2493
      %v2536 = vpop.f32.mrf.mxu0
      %v2537 = vadd.f32 0.0, %v2536
      %2538 = vmatmul.f32.gmra.mxu0 %v2497
      %v2539 = vpop.f32.mrf.mxu0
      %v2540 = vadd.f32 0.0, %v2539
      %2541 = vdwg.mxu0
      %2542 = vmatpush.msra.mxu0 %v2403
      %2543 = vmatpush.msra.mxu0 %v2401
      %2544 = vmatpush.msra.mxu0 %v2399
      %2545 = vmatpush.msra.mxu0 %v2397
      %2546 = vmatpush.msra.mxu0 %v2395
      %2547 = vmatpush.msra.mxu0 %v2393
      %2548 = vmatpush.msra.mxu0 %v2391
      %2549 = vmatpush.msra.mxu0 %v2389
      %2550 = vmatpush.msra.mxu0 %v2387
      %2551 = vmatpush.msra.mxu0 %v2385
      %2552 = vmatpush.msra.mxu0 %v2383
      %2553 = vmatpush.msra.mxu0 %v2381
      %2554 = vmatpush.msra.mxu0 %v2379
      %2555 = vmatpush.msra.mxu0 %v2377
      %2556 = vmatpush.msra.mxu0 %v2375
      %2557 = vmatpush.msra.mxu0 %v2373
      %2558 = vmatmul.f32.gmra.mxu0 %v2470
      %v2559 = vpop.f32.mrf.mxu0
      %v2560 = vadd.f32 %v2519, %v2559
      %2561 = vmatmul.f32.gmra.mxu0 %v2474
      %v2562 = vpop.f32.mrf.mxu0
      %v2563 = vadd.f32 %v2522, %v2562
      %2564 = vmatmul.f32.gmra.mxu0 %v2478
      %v2565 = vpop.f32.mrf.mxu0
      %v2566 = vadd.f32 %v2525, %v2565
      %2567 = vmatmul.f32.gmra.mxu0 %v2482
      %v2568 = vpop.f32.mrf.mxu0
      %v2569 = vadd.f32 %v2528, %v2568
      %2570 = vmatmul.f32.gmra.mxu0 %v2486
      %v2571 = vpop.f32.mrf.mxu0
      %v2572 = vadd.f32 %v2531, %v2571
      %2573 = vmatmul.f32.gmra.mxu0 %v2490
      %v2574 = vpop.f32.mrf.mxu0
      %v2575 = vadd.f32 %v2534, %v2574
      %2576 = vmatmul.f32.gmra.mxu0 %v2494
      %v2577 = vpop.f32.mrf.mxu0
      %v2578 = vadd.f32 %v2537, %v2577
      %2579 = vmatmul.f32.gmra.mxu0 %v2498
      %v2580 = vpop.f32.mrf.mxu0
      %v2581 = vadd.f32 %v2540, %v2580
      %2582 = vdwg.mxu0
      %2583 = vmatpush.msra.mxu0 %v2435
      %2584 = vmatpush.msra.mxu0 %v2433
      %2585 = vmatpush.msra.mxu0 %v2431
      %2586 = vmatpush.msra.mxu0 %v2429
      %2587 = vmatpush.msra.mxu0 %v2427
      %2588 = vmatpush.msra.mxu0 %v2425
      %2589 = vmatpush.msra.mxu0 %v2423
      %2590 = vmatpush.msra.mxu0 %v2421
      %2591 = vmatpush.msra.mxu0 %v2419
      %2592 = vmatpush.msra.mxu0 %v2417
      %2593 = vmatpush.msra.mxu0 %v2415
      %2594 = vmatpush.msra.mxu0 %v2413
      %2595 = vmatpush.msra.mxu0 %v2411
      %2596 = vmatpush.msra.mxu0 %v2409
      %2597 = vmatpush.msra.mxu0 %v2407
      %2598 = vmatpush.msra.mxu0 %v2405
      %2599 = vmatmul.f32.gmra.mxu0 %v2471
      %v2600 = vpop.f32.mrf.mxu0
      %v2601 = vadd.f32 %v2560, %v2600
      %2602 = vmatmul.f32.gmra.mxu0 %v2475
      %v2603 = vpop.f32.mrf.mxu0
      %v2604 = vadd.f32 %v2563, %v2603
      %2605 = vmatmul.f32.gmra.mxu0 %v2479
      %v2606 = vpop.f32.mrf.mxu0
      %v2607 = vadd.f32 %v2566, %v2606
      %2608 = vmatmul.f32.gmra.mxu0 %v2483
      %v2609 = vpop.f32.mrf.mxu0
      %v2610 = vadd.f32 %v2569, %v2609
      %2611 = vmatmul.f32.gmra.mxu0 %v2487
      %v2612 = vpop.f32.mrf.mxu0
      %v2613 = vadd.f32 %v2572, %v2612
      %2614 = vmatmul.f32.gmra.mxu0 %v2491
      %v2615 = vpop.f32.mrf.mxu0
      %v2616 = vadd.f32 %v2575, %v2615
      %2617 = vmatmul.f32.gmra.mxu0 %v2495
      %v2618 = vpop.f32.mrf.mxu0
      %v2619 = vadd.f32 %v2578, %v2618
      %2620 = vmatmul.f32.gmra.mxu0 %v2499
      %v2621 = vpop.f32.mrf.mxu0
      %v2622 = vadd.f32 %v2581, %v2621
      %2623 = vdwg.mxu0
      %2624 = vmatpush.msra.mxu0 %v2467
      %2625 = vmatpush.msra.mxu0 %v2465
      %2626 = vmatpush.msra.mxu0 %v2463
      %2627 = vmatpush.msra.mxu0 %v2461
      %2628 = vmatpush.msra.mxu0 %v2459
      %2629 = vmatpush.msra.mxu0 %v2457
      %2630 = vmatpush.msra.mxu0 %v2455
      %2631 = vmatpush.msra.mxu0 %v2453
      %2632 = vmatpush.msra.mxu0 %v2451
      %2633 = vmatpush.msra.mxu0 %v2449
      %2634 = vmatpush.msra.mxu0 %v2447
      %2635 = vmatpush.msra.mxu0 %v2445
      %2636 = vmatpush.msra.mxu0 %v2443
      %2637 = vmatpush.msra.mxu0 %v2441
      %2638 = vmatpush.msra.mxu0 %v2439
      %2639 = vmatpush.msra.mxu0 %v2437
      %2640 = vmatmul.f32.gmra.mxu0 %v2472
      %v2641 = vpop.f32.mrf.mxu0
      %v2642 = vadd.f32 %v2601, %v2641
      %2643 = vmatmul.f32.gmra.mxu0 %v2476
      %v2644 = vpop.f32.mrf.mxu0
      %v2645 = vadd.f32 %v2604, %v2644
      %2646 = vmatmul.f32.gmra.mxu0 %v2480
      %v2647 = vpop.f32.mrf.mxu0
      %v2648 = vadd.f32 %v2607, %v2647
      %2649 = vmatmul.f32.gmra.mxu0 %v2484
      %v2650 = vpop.f32.mrf.mxu0
      %v2651 = vadd.f32 %v2610, %v2650
      %2652 = vmatmul.f32.gmra.mxu0 %v2488
      %v2653 = vpop.f32.mrf.mxu0
      %v2654 = vadd.f32 %v2613, %v2653
      %2655 = vmatmul.f32.gmra.mxu0 %v2492
      %v2656 = vpop.f32.mrf.mxu0
      %v2657 = vadd.f32 %v2616, %v2656
      %2658 = vmatmul.f32.gmra.mxu0 %v2496
      %v2659 = vpop.f32.mrf.mxu0
      %v2660 = vadd.f32 %v2619, %v2659
      %2661 = vmatmul.f32.gmra.mxu0 %v2500
      %v2662 = vpop.f32.mrf.mxu0
      %v2663 = vadd.f32 %v2622, %v2662
      %2664 = vdwg.mxu0
      %2665 = vmatpush.msra.mxu0 %v2372
      %2666 = vmatpush.msra.mxu0 %v2370
      %2667 = vmatpush.msra.mxu0 %v2368
      %2668 = vmatpush.msra.mxu0 %v2366
      %2669 = vmatpush.msra.mxu0 %v2364
      %2670 = vmatpush.msra.mxu0 %v2362
      %2671 = vmatpush.msra.mxu0 %v2360
      %2672 = vmatpush.msra.mxu0 %v2358
      %2673 = vmatpush.msra.mxu0 %v2356
      %2674 = vmatpush.msra.mxu0 %v2354
      %2675 = vmatpush.msra.mxu0 %v2352
      %2676 = vmatpush.msra.mxu0 %v2350
      %2677 = vmatpush.msra.mxu0 %v2348
      %2678 = vmatpush.msra.mxu0 %v2346
      %2679 = vmatpush.msra.mxu0 %v2344
      %2680 = vmatpush.msra.mxu0 %v2342
      %2681 = vmatmul.f32.gmra.mxu0 %v2469
      %v2682 = vpop.f32.mrf.mxu0
      %v2683 = vadd.f32 0.0, %v2682
      %2684 = vmatmul.f32.gmra.mxu0 %v2473
      %v2685 = vpop.f32.mrf.mxu0
      %v2686 = vadd.f32 0.0, %v2685
      %2687 = vmatmul.f32.gmra.mxu0 %v2477
      %v2688 = vpop.f32.mrf.mxu0
      %v2689 = vadd.f32 0.0, %v2688
      %2690 = vmatmul.f32.gmra.mxu0 %v2481
      %v2691 = vpop.f32.mrf.mxu0
      %v2692 = vadd.f32 0.0, %v2691
      %2693 = vmatmul.f32.gmra.mxu0 %v2485
      %v2694 = vpop.f32.mrf.mxu0
      %v2695 = vadd.f32 0.0, %v2694
      %2696 = vmatmul.f32.gmra.mxu0 %v2489
      %v2697 = vpop.f32.mrf.mxu0
      %v2698 = vadd.f32 0.0, %v2697
      %2699 = vmatmul.f32.gmra.mxu0 %v2493
      %v2700 = vpop.f32.mrf.mxu0
      %v2701 = vadd.f32 0.0, %v2700
      %2702 = vmatmul.f32.gmra.mxu0 %v2497
      %v2703 = vpop.f32.mrf.mxu0
      %v2704 = vadd.f32 0.0, %v2703
      %2705 = vdwg.mxu0
      %2706 = vmatpush.msra.mxu0 %v2404
      %2707 = vmatpush.msra.mxu0 %v2402
      %2708 = vmatpush.msra.mxu0 %v2400
      %2709 = vmatpush.msra.mxu0 %v2398
      %2710 = vmatpush.msra.mxu0 %v2396
      %2711 = vmatpush.msra.mxu0 %v2394
      %2712 = vmatpush.msra.mxu0 %v2392
      %2713 = vmatpush.msra.mxu0 %v2390
      %2714 = vmatpush.msra.mxu0 %v2388
      %2715 = vmatpush.msra.mxu0 %v2386
      %2716 = vmatpush.msra.mxu0 %v2384
      %2717 = vmatpush.msra.mxu0 %v2382
      %2718 = vmatpush.msra.mxu0 %v2380
      %2719 = vmatpush.msra.mxu0 %v2378
      %2720 = vmatpush.msra.mxu0 %v2376
      %2721 = vmatpush.msra.mxu0 %v2374
      %2722 = vmatmul.f32.gmra.mxu0 %v2470
      %v2723 = vpop.f32.mrf.mxu0
      %v2724 = vadd.f32 %v2683, %v2723
      %2725 = vmatmul.f32.gmra.mxu0 %v2474
      %v2726 = vpop.f32.mrf.mxu0
      %v2727 = vadd.f32 %v2686, %v2726
      %2728 = vmatmul.f32.gmra.mxu0 %v2478
      %v2729 = vpop.f32.mrf.mxu0
      %v2730 = vadd.f32 %v2689, %v2729
      %2731 = vmatmul.f32.gmra.mxu0 %v2482
      %v2732 = vpop.f32.mrf.mxu0
      %v2733 = vadd.f32 %v2692, %v2732
      %2734 = vmatmul.f32.gmra.mxu0 %v2486
      %v2735 = vpop.f32.mrf.mxu0
      %v2736 = vadd.f32 %v2695, %v2735
      %2737 = vmatmul.f32.gmra.mxu0 %v2490
      %v2738 = vpop.f32.mrf.mxu0
      %v2739 = vadd.f32 %v2698, %v2738
      %2740 = vmatmul.f32.gmra.mxu0 %v2494
      %v2741 = vpop.f32.mrf.mxu0
      %v2742 = vadd.f32 %v2701, %v2741
      %2743 = vmatmul.f32.gmra.mxu0 %v2498
      %v2744 = vpop.f32.mrf.mxu0
      %v2745 = vadd.f32 %v2704, %v2744
      %2746 = vdwg.mxu0
      %2747 = vmatpush.msra.mxu0 %v2436
      %2748 = vmatpush.msra.mxu0 %v2434
      %2749 = vmatpush.msra.mxu0 %v2432
      %2750 = vmatpush.msra.mxu0 %v2430
      %2751 = vmatpush.msra.mxu0 %v2428
      %2752 = vmatpush.msra.mxu0 %v2426
      %2753 = vmatpush.msra.mxu0 %v2424
      %2754 = vmatpush.msra.mxu0 %v2422
      %2755 = vmatpush.msra.mxu0 %v2420
      %2756 = vmatpush.msra.mxu0 %v2418
      %2757 = vmatpush.msra.mxu0 %v2416
      %2758 = vmatpush.msra.mxu0 %v2414
      %2759 = vmatpush.msra.mxu0 %v2412
      %2760 = vmatpush.msra.mxu0 %v2410
      %2761 = vmatpush.msra.mxu0 %v2408
      %2762 = vmatpush.msra.mxu0 %v2406
      %2763 = vmatmul.f32.gmra.mxu0 %v2471
      %v2764 = vpop.f32.mrf.mxu0
      %v2765 = vadd.f32 %v2724, %v2764
      %2766 = vmatmul.f32.gmra.mxu0 %v2475
      %v2767 = vpop.f32.mrf.mxu0
      %v2768 = vadd.f32 %v2727, %v2767
      %2769 = vmatmul.f32.gmra.mxu0 %v2479
      %v2770 = vpop.f32.mrf.mxu0
      %v2771 = vadd.f32 %v2730, %v2770
      %2772 = vmatmul.f32.gmra.mxu0 %v2483
      %v2773 = vpop.f32.mrf.mxu0
      %v2774 = vadd.f32 %v2733, %v2773
      %2775 = vmatmul.f32.gmra.mxu0 %v2487
      %v2776 = vpop.f32.mrf.mxu0
      %v2777 = vadd.f32 %v2736, %v2776
      %2778 = vmatmul.f32.gmra.mxu0 %v2491
      %v2779 = vpop.f32.mrf.mxu0
      %v2780 = vadd.f32 %v2739, %v2779
      %2781 = vmatmul.f32.gmra.mxu0 %v2495
      %v2782 = vpop.f32.mrf.mxu0
      %v2783 = vadd.f32 %v2742, %v2782
      %2784 = vmatmul.f32.gmra.mxu0 %v2499
      %v2785 = vpop.f32.mrf.mxu0
      %v2786 = vadd.f32 %v2745, %v2785
      %2787 = vdwg.mxu0
      %2788 = vmatpush.msra.mxu0 %v2468
      %2789 = vmatpush.msra.mxu0 %v2466
      %2790 = vmatpush.msra.mxu0 %v2464
      %2791 = vmatpush.msra.mxu0 %v2462
      %2792 = vmatpush.msra.mxu0 %v2460
      %2793 = vmatpush.msra.mxu0 %v2458
      %2794 = vmatpush.msra.mxu0 %v2456
      %2795 = vmatpush.msra.mxu0 %v2454
      %2796 = vmatpush.msra.mxu0 %v2452
      %2797 = vmatpush.msra.mxu0 %v2450
      %2798 = vmatpush.msra.mxu0 %v2448
      %2799 = vmatpush.msra.mxu0 %v2446
      %2800 = vmatpush.msra.mxu0 %v2444
      %2801 = vmatpush.msra.mxu0 %v2442
      %2802 = vmatpush.msra.mxu0 %v2440
      %2803 = vmatpush.msra.mxu0 %v2438
      %2804 = vmatmul.f32.gmra.mxu0 %v2472
      %v2805 = vpop.f32.mrf.mxu0
      %v2806 = vadd.f32 %v2765, %v2805
      %2807 = vmatmul.f32.gmra.mxu0 %v2476
      %v2808 = vpop.f32.mrf.mxu0
      %v2809 = vadd.f32 %v2768, %v2808
      %2810 = vmatmul.f32.gmra.mxu0 %v2480
      %v2811 = vpop.f32.mrf.mxu0
      %v2812 = vadd.f32 %v2771, %v2811
      %2813 = vmatmul.f32.gmra.mxu0 %v2484
      %v2814 = vpop.f32.mrf.mxu0
      %v2815 = vadd.f32 %v2774, %v2814
      %2816 = vmatmul.f32.gmra.mxu0 %v2488
      %v2817 = vpop.f32.mrf.mxu0
      %v2818 = vadd.f32 %v2777, %v2817
      %2819 = vmatmul.f32.gmra.mxu0 %v2492
      %v2820 = vpop.f32.mrf.mxu0
      %v2821 = vadd.f32 %v2780, %v2820
      %2822 = vmatmul.f32.gmra.mxu0 %v2496
      %v2823 = vpop.f32.mrf.mxu0
      %v2824 = vadd.f32 %v2783, %v2823
      %2825 = vmatmul.f32.gmra.mxu0 %v2500
      %v2826 = vpop.f32.mrf.mxu0
      %v2827 = vadd.f32 %v2786, %v2826
      %2828 = vdwg.mxu0
      %2829 = vst [vmem:[%s273] sm:$0xff] %v2642
      %2830 = vst [vmem:[%s273 + $0x8] sm:$0xff] %v2806
      %2831 = vst [vmem:[%s273 + $0x10] sm:$0xff] %v2645
      %2832 = vst [vmem:[%s273 + $0x18] sm:$0xff] %v2809
      %2833 = vst [vmem:[%s273 + $0x20] sm:$0xff] %v2648
      %2834 = vst [vmem:[%s273 + $0x28] sm:$0xff] %v2812
      %2835 = vst [vmem:[%s273 + $0x30] sm:$0xff] %v2651
      %2836 = vst [vmem:[%s273 + $0x38] sm:$0xff] %v2815
      %2837 = vst [vmem:[%s273 + $0x40] sm:$0xff] %v2654
      %2838 = vst [vmem:[%s273 + $0x48] sm:$0xff] %v2818
      %2839 = vst [vmem:[%s273 + $0x50] sm:$0xff] %v2657
      %2840 = vst [vmem:[%s273 + $0x58] sm:$0xff] %v2821
      %2841 = vst [vmem:[%s273 + $0x60] sm:$0xff] %v2660
      %2842 = vst [vmem:[%s273 + $0x68] sm:$0xff] %v2824
      %2843 = vst [vmem:[%s273 + $0x70] sm:$0xff] %v2663
      %2844 = vst [vmem:[%s273 + $0x78] sm:$0xff] %v2827
      %v2845 = vmul.f32 %v281, %v281
      %v2846 = vmul.f32 %v282, %v282
      %v2847 = vmul.f32 %v283, %v283
      %v2848 = vmul.f32 %v284, %v284
      %v2849 = vmul.f32 %v285, %v285
      %v2850 = vmul.f32 %v286, %v286
      %v2851 = vmul.f32 %v287, %v287
      %v2852 = vmul.f32 %v288, %v288
      %v2853 = vmul.f32 %v289, %v289
      %v2854 = vmul.f32 %v290, %v290
      %v2855 = vmul.f32 %v291, %v291
      %v2856 = vmul.f32 %v292, %v292
      %v2857 = vmul.f32 %v293, %v293
      %v2858 = vmul.f32 %v294, %v294
      %v2859 = vmul.f32 %v295, %v295
      %v2860 = vmul.f32 %v296, %v296
      %v2861 = vadd.f32 %v2845, %v2847
      %v2862 = vadd.f32 %v2861, %v2849
      %v2863 = vadd.f32 %v2862, %v2851
      %v2864 = vadd.f32 %v2863, %v2853
      %v2865 = vadd.f32 %v2864, %v2855
      %v2866 = vadd.f32 %v2865, %v2857
      %v2867 = vadd.f32 %v2866, %v2859
      %v2868 = vrot.slane %v2867, 4
      %v2869 = vadd.f32 %v2867, %v2868
      %v2870 = vrot.slane %v2869, 2
      %v2871 = vadd.f32 %v2869, %v2870
      %v2872 = vrot.slane %v2871, 1
      %v2873 = vadd.f32 %v2871, %v2872
      %v2874 = vadd.f32 %v2846, %v2848
      %v2875 = vadd.f32 %v2874, %v2850
      %v2876 = vadd.f32 %v2875, %v2852
      %v2877 = vadd.f32 %v2876, %v2854
      %v2878 = vadd.f32 %v2877, %v2856
      %v2879 = vadd.f32 %v2878, %v2858
      %v2880 = vadd.f32 %v2879, %v2860
      %v2881 = vrot.slane %v2880, 4
      %v2882 = vadd.f32 %v2880, %v2881
      %v2883 = vrot.slane %v2882, 2
      %v2884 = vadd.f32 %v2882, %v2883
      %v2885 = vrot.slane %v2884, 1
      %v2886 = vadd.f32 %v2884, %v2885
      %v2887 = vadd.f32 %v1489, %v2873
      %v2888 = vadd.f32 %v1558, %v2886
      %v2889 = vmax.f32 %v2887, 0.0
      %v2890 = vmax.f32 %v2888, 0.0
      %vm2891 = vcmask 1040384
      %v2892 = vsel %vm2891, %v2889, 0.0
      %v2893 = vsel %vm2891, %v2890, 0.0
      %v2894 = vadd.f32 %v2892, %v2893
      %2895 = vadd.xlane.f32.xlu0 %v2894
      %v2896 = vpop.xlane.xlu0 %2895
      %v2897 = vrot.slane %v2896, 4
      %v2898 = vadd.f32 %v2896, %v2897
      %v2899 = vrot.slane %v2898, 2
      %v2900 = vadd.f32 %v2898, %v2899
      %v2901 = vrot.slane %v2900, 1
      %v2902 = vadd.f32 %v2900, %v2901
      %s2903 = vtos %v2902
      %v2904 = vstv %s2903
      %v2905 = vadd.f32 %v2904, 0.0
      %vm2906 = vcmask 0
      %2907 = vst.msk [vmem:[%s280] sm:$0x1] %vm2906, %v2905
      %s2908 = smul.u32 2, %s22
      %p2909 = scmp.lt.s32.totalorder %s21, 1
      %s2910 = scalar_select %p2909, %s21, 1
      %p2911 = scmp.lt.s32.totalorder %s2908, 1
      %s2912 = scalar_select %p2911, %s2908, 1
      %s2913 = smul.addr %s2910, 16
      %s2914 = sadd.s32 %s2912, %s2913
      %s2915 = smul.addr %s2914, 8
      %s2916 = scalar_lea.vmem %s4, %s2915
      %p2917 = scmp.lt.s32.totalorder %s21, 1
      %s2918 = scalar_select %p2917, %s21, 1
      %p2919 = scmp.lt.s32.totalorder %s22, 0
      %s2920 = scalar_select %p2919, %s22, 0
      %s2921 = sadd.s32 %s2920, %s2918
      %s2922 = scalar_lea.vmem %s5, %s2921
      // Predicated region
      $region37: #{vq_forward.1} parent=35 // pred_check
        %p2923 = pneg %p140
      $region38: #{vq_forward.1} parent=35 // pred_check_branch
        %2925 = sbr.rel (%p2923) target = $region40
      $region39: #{vq_forward.1} parent=35 // pred_region
        %s2926 = smul.u32 2, %s22
      $region40: #{vq_forward.1} parent=35 // pred_fallthru
        _
      // Predicated region
      $region41: #{vq_forward.1} parent=35 // pred_check
        %p2927 = pneg %p168
      $region42: #{vq_forward.1} parent=35 // pred_check_branch
        %2929 = sbr.rel (%p2927) target = $region44
      $region43: #{vq_forward.1} parent=35 // pred_region
        _
      $region44: #{vq_forward.1} parent=35 // pred_fallthru
        _
    $region36: #{vq_forward.1} parent=5 // pred_fallthru
      _
    %p2930 = scmp.le.s32.totalorder 2, %s12
    // Predicated region
    $region45: #{vq_forward.1} parent=5 // pred_check
      %p2931 = pneg %p2930
    $region46: #{vq_forward.1} parent=5 // pred_check_branch
      %2933 = sbr.rel (%p2931) target = $region48
    $region47: #{vq_forward.1} parent=5 // pred_region
      %s2934 = ssub.s32 %s12, 2
      // Predicated region
      $region49: #{vq_forward.1} parent=47 // pred_check
        %p2935 = pneg %p146
      $region50: #{vq_forward.1} parent=47 // pred_check_branch
        %2937 = sbr.rel (%p2935) target = $region52
      $region51: #{vq_forward.1} parent=47 // pred_region
        %s2938 = smul.u32 2, %s24
        %p2939 = scmp.lt.s32.totalorder %s23, 1
        %s2940 = scalar_select %p2939, %s23, 1
        %p2941 = scmp.lt.s32.totalorder %s2938, 1
        %s2942 = scalar_select %p2941, %s2938, 1
        %s2943 = smul.addr %s2940, 16
        %s2944 = sadd.s32 %s2942, %s2943
        %s2945 = smul.addr %s2944, 8
        %s2946 = scalar_lea.vmem %s4, %s2945
      $region52: #{vq_forward.1} parent=47 // pred_fallthru
        _
      // Predicated region
      $region53: #{vq_forward.1} parent=47 // pred_check
        %p2947 = pneg %p174
      $region54: #{vq_forward.1} parent=47 // pred_check_branch
        %2949 = sbr.rel (%p2947) target = $region56
      $region55: #{vq_forward.1} parent=47 // pred_region
        %p2950 = scmp.lt.s32.totalorder %s23, 1
        %s2951 = scalar_select %p2950, %s23, 1
        %p2952 = scmp.lt.s32.totalorder %s24, 0
        %s2953 = scalar_select %p2952, %s24, 0
        %s2954 = sadd.s32 %s2953, %s2951
        %s2955 = scalar_lea.vmem %s5, %s2954
      $region56: #{vq_forward.1} parent=47 // pred_fallthru
        _
    $region48: #{vq_forward.1} parent=5 // pred_fallthru
      _
  $region6: #{vq_forward.1} parent=0 // loop_footer
    %s16 = sadd.s32 1, %s12
  $region7: #{vq_forward.1} parent=0 // loop_footer_branch
    %11 = sbr.rel target = $region3
  $region8: #{vq_forward.1} parent=0 // loop_exit
    _

</llo_original>
